<compile_context>
chip_gen: v7x
topology: tpu7x:2x2x1
jax: 0.10.0
libtpu: 0.0.40
codegen_flags: <defaults>
</compile_context>

<pallas_src>
import math
from functools import partial

import jax
import jax.numpy as jnp
import numpy as np
from jax import lax
from jax.experimental import pallas as pl
from jax.experimental.pallas import tpu as pltpu


# -----------------------------------------------------------------------------
# Fused Pallas kernel: QKV + feature-map projections -> FAVOR+ -> out-proj
# -----------------------------------------------------------------------------
def _performer_fused_kernel(x_ref, wbig_ref, bbig_ref, wo_ref, bo_ref, o_ref,
                            *, H, M, Dh):
    """One batch element.

    x_ref    : (N, D)                     activations (channels last)
    wbig_ref : (2*H*M + 3*D, D)           [Wq'; Wk'; Wq; Wk; Wv]  (torch layout)
    bbig_ref : (1, 2*H*M + 3*D)           matching biases
    wo_ref   : (D, D)                     output projection (torch layout)
    bo_ref   : (1, D)
    o_ref    : (N, D)
    """
    D = H * Dh
    x = x_ref[...].astype(jnp.float32)
    n = x.shape[0]

    # One big lane-dense matmul: (N, D) x (D, 2HM + 3D)  (contract torch axis 1)
    big = lax.dot_general(x, wbig_ref[...].astype(jnp.float32),
                          (((1,), (1,)), ((), ())),
                          preferred_element_type=jnp.float32)
    big = big + bbig_ref[...].astype(jnp.float32)

    HM = H * M
    qd_all = big[:, 0:HM]                 # fused feature-map logits (queries)
    kd_all = big[:, HM:2 * HM]            # fused feature-map logits (keys)
    q_all = big[:, 2 * HM:2 * HM + D]
    k_all = big[:, 2 * HM + D:2 * HM + 2 * D]
    v_all = big[:, 2 * HM + 2 * D:2 * HM + 3 * D]

    dn2half = 0.5 / math.sqrt(float(Dh))  # 0.5 * data_norm^2
    ratio = float(M) ** (-0.5)
    eps_feat = 1e-4
    eps_den = 0.01

    outs = []
    for h in range(H):                    # static unroll over heads
        qh = q_all[:, h * Dh:(h + 1) * Dh]
        kh = k_all[:, h * Dh:(h + 1) * Dh]
        vh = v_all[:, h * Dh:(h + 1) * Dh]
        qdh = qd_all[:, h * M:(h + 1) * M]
        kdh = kd_all[:, h * M:(h + 1) * M]

        q_diag = jnp.sum(qh * qh, axis=-1, keepdims=True) * dn2half
        k_diag = jnp.sum(kh * kh, axis=-1, keepdims=True) * dn2half

        q_stab = jnp.max(qdh, axis=-1, keepdims=True)   # per-query row
        k_stab = jnp.max(kdh)                           # global over keys

        q_prime = ratio * jnp.exp(qdh - q_diag - q_stab) + eps_feat   # (N, M)
        k_prime = ratio * jnp.exp(kdh - k_diag - k_stab) + eps_feat   # (N, M)

        # Fold the normalizer into the kv matmul: v' = [v | 1]
        v_aug = jnp.concatenate(
            [vh, jnp.ones((n, 1), jnp.float32)], axis=-1)             # (N, Dh+1)
        kv_aug = lax.dot_general(k_prime, v_aug, (((0,), (0,)), ((), ())),
                                 preferred_element_type=jnp.float32)  # (M, Dh+1)
        qkv_aug = jnp.dot(q_prime, kv_aug,
                          preferred_element_type=jnp.float32)         # (N, Dh+1)

        denom = jnp.maximum(qkv_aug[:, Dh:Dh + 1], eps_den)           # (N, 1)
        outs.append(qkv_aug[:, :Dh] * pl.reciprocal(denom, approx=True))

    attn = jnp.concatenate(outs, axis=-1)                             # (N, D)

    # Output projection (torch layout, contract on axis 1)
    out = lax.dot_general(attn, wo_ref[...].astype(jnp.float32),
                          (((1,), (1,)), ((), ())),
                          preferred_element_type=jnp.float32)
    o_ref[...] = (out + bo_ref[...].astype(jnp.float32)).astype(o_ref.dtype)


# -----------------------------------------------------------------------------
# Host-side weight fusion + wrapper
# -----------------------------------------------------------------------------
def build_fused_weights(params, proj, n_heads):
    """Precompute [Wq'; Wk'; Wq; Wk; Wv] (torch layout) and stacked bias."""
    D = params["wq"].shape[0]
    H = n_heads
    Dh = D // H
    M = proj.shape[1]
    dn = float(Dh) ** (-0.25)

    wq, wk, wv = params["wq"], params["wk"], params["wv"]
    bq, bk, bv = params["bq"], params["bk"], params["bv"]

    wq_h = wq.reshape(H, Dh, D)
    wk_h = wk.reshape(H, Dh, D)
    bq_h = bq.reshape(H, Dh)
    bk_h = bk.reshape(H, Dh)

    # Wq'_h = dn * proj_h @ Wq_h   -> (H*M, D) ;  bq'_h = dn * proj_h @ bq_h
    wqp = (dn * jnp.einsum("hmd,hdk->hmk", proj, wq_h)).reshape(H * M, D)
    wkp = (dn * jnp.einsum("hmd,hdk->hmk", proj, wk_h)).reshape(H * M, D)
    bqp = (dn * jnp.einsum("hmd,hd->hm", proj, bq_h)).reshape(H * M)
    bkp = (dn * jnp.einsum("hmd,hd->hm", proj, bk_h)).reshape(H * M)

    # Lane-dense fused feature weights first (128-aligned columns of `big`).
    w_big = jnp.concatenate([wqp, wkp, wq, wk, wv], axis=0)            # (2HM+3D, D)
    b_big = jnp.concatenate([bqp, bkp, bq, bk, bv], axis=0)[None, :]   # (1, 2HM+3D)
    return w_big, b_big


def multihead_performer_attention(x, params, proj, n_heads):
    """Full forward pass in one fused Pallas kernel per batch element."""
    B, N, D = x.shape
    H = n_heads
    Dh = D // H
    M = proj.shape[1]
    P = 2 * H * M + 3 * D

    w_big, b_big = build_fused_weights(params, proj, H)
    wo = params["wo"]
    bo = params["bo"].reshape(1, D)

    kernel = partial(_performer_fused_kernel, H=H, M=M, Dh=Dh)
    return pl.pallas_call(
        kernel,
        out_shape=jax.ShapeDtypeStruct((B, N, D), x.dtype),
        grid=(B,),
        in_specs=[
            pl.BlockSpec((None, N, D), lambda b: (b, 0, 0)),   # x (per batch)
            pl.BlockSpec((P, D), lambda b: (0, 0)),            # fused weights (resident)
            pl.BlockSpec((1, P), lambda b: (0, 0)),            # fused bias
            pl.BlockSpec((D, D), lambda b: (0, 0)),            # out-proj weight
            pl.BlockSpec((1, D), lambda b: (0, 0)),            # out-proj bias
        ],
        out_specs=pl.BlockSpec((None, N, D), lambda b: (b, 0, 0)),
        compiler_params=pltpu.CompilerParams(
            dimension_semantics=("parallel",),
            vmem_limit_bytes=32 * 1024 * 1024),
    )(x, w_big, b_big, wo, bo)


# -----------------------------------------------------------------------------
# Deterministic parameter construction (mirrors __init__ shapes)
# -----------------------------------------------------------------------------
def gaussian_orthogonal_random_matrix(key, nb_rows, nb_cols):
    nb_full = nb_rows // nb_cols
    keys = jax.random.split(key, nb_full + 2)
    blocks = []
    for i in range(nb_full):
        unstructured = jax.random.normal(keys[i], (nb_cols, nb_cols), jnp.float32)
        qm, _ = jnp.linalg.qr(unstructured)
        blocks.append(qm.T)
    rem = nb_rows - nb_full * nb_cols
    if rem > 0:
        unstructured = jax.random.normal(keys[nb_full], (nb_cols, nb_cols), jnp.float32)
        qm, _ = jnp.linalg.qr(unstructured)
        blocks.append(qm.T[:rem])
    final = jnp.concatenate(blocks, axis=0)                              # (rows, cols)
    multiplier = jnp.linalg.norm(
        jax.random.normal(keys[-1], (nb_rows, nb_cols), jnp.float32), axis=1)
    return multiplier[:, None] * final


def create_proj_matrix(key, num_heads, proj_dim, input_dim):
    keys = jax.random.split(key, num_heads)
    return jnp.stack(
        [gaussian_orthogonal_random_matrix(keys[h], proj_dim, input_dim)
         for h in range(num_heads)], axis=0)


def init_params(key, d_model):
    ks = jax.random.split(key, 8)
    s = 1.0 / math.sqrt(d_model)
    return {
        "wq": jax.random.uniform(ks[0], (d_model, d_model), jnp.float32, -s, s),
        "bq": jax.random.uniform(ks[1], (d_model,), jnp.float32, -s, s),
        "wk": jax.random.uniform(ks[2], (d_model, d_model), jnp.float32, -s, s),
        "bk": jax.random.uniform(ks[3], (d_model,), jnp.float32, -s, s),
        "wv": jax.random.uniform(ks[4], (d_model, d_model), jnp.float32, -s, s),
        "bv": jax.random.uniform(ks[5], (d_model,), jnp.float32, -s, s),
        "wo": jax.random.uniform(ks[6], (d_model, d_model), jnp.float32, -s, s),
        "bo": jax.random.uniform(ks[7], (d_model,), jnp.float32, -s, s),
    }


# -----------------------------------------------------------------------------
# Pure-JAX reference (mirrors the PyTorch forward, eval / non-causal path)
# -----------------------------------------------------------------------------
def reference_forward(x, params, proj, n_heads):
    B, N, D = x.shape
    H = n_heads
    Dh = D // H
    q = x @ params["wq"].T + params["bq"]
    k = x @ params["wk"].T + params["bk"]
    v = x @ params["wv"].T + params["bv"]
    q = q.reshape(B, N, H, Dh).transpose(0, 2, 1, 3)
    k = k.reshape(B, N, H, Dh).transpose(0, 2, 1, 3)
    v = v.reshape(B, N, H, Dh).transpose(0, 2, 1, 3)

    dn = Dh ** (-0.25)
    ratio = proj.shape[1] ** (-0.5)
    q_dash = jnp.einsum("bhnd,hjd->bhnj", dn * q, proj)
    k_dash = jnp.einsum("bhnd,hjd->bhnj", dn * k, proj)
    q_diag = (jnp.sum(q ** 2, -1) * 0.5 * dn * dn)[..., None]
    k_diag = (jnp.sum(k ** 2, -1) * 0.5 * dn * dn)[..., None]
    q_prime = ratio * jnp.exp(q_dash - q_diag
                              - jnp.max(q_dash, axis=-1, keepdims=True)) + 1e-4
    k_prime = ratio * jnp.exp(k_dash - k_diag
                              - jnp.max(k_dash, axis=(-1, -2), keepdims=True)) + 1e-4

    kv = jnp.einsum("bhnm,bhnd->bhmd", k_prime, v)
    qkv = jnp.einsum("bhnm,bhmd->bhnd", q_prime, kv)
    normalizer = jnp.einsum("bhnm,bhm->bhn", q_prime, k_prime.sum(-2))
    out = qkv / jnp.clip(normalizer[..., None], 0.01, None)
    out = out.transpose(0, 2, 1, 3).reshape(B, N, D)
    return out @ params["wo"].T + params["bo"]


# -----------------------------------------------------------------------------
if __name__ == "__main__":
    # Small shapes consistent with the module: d_model=32, n_heads=4 (Dh=8),
    # approx_attn_dim=64 (module default), batch=2, seq=16.
    B, N, D = 2, 16, 32
    H = 4
    Dh = D // H
    M = 64  # approx_attn_dim

    root = jax.random.PRNGKey(0)
    k_x, k_par, k_proj = jax.random.split(root, 3)

    x = jax.random.normal(k_x, (B, N, D), jnp.float32)
    params = init_params(k_par, D)
    proj = create_proj_matrix(k_proj, H, M, Dh)   # eval_proj (orthogonal), (H, M, Dh)

    out = multihead_performer_attention(x, params, proj, H)
    out = jax.block_until_ready(out)

    ref = jax.block_until_ready(reference_forward(x, params, proj, H))
    np.testing.assert_allclose(np.asarray(out), np.asarray(ref), rtol=2e-2, atol=2e-2)

    assert out.shape == (B, N, D)
    print("KERNEL_OK")
</pallas_src>

<mosaic_0001>
module attributes {stable_mosaic.version = 11 : i64} {
  func.func @_performer_fused_kernel(%arg0: i32, %arg1: memref<1x16x32xf32, #tpu.memory_space<vmem>>, %arg2: memref<608x32xf32, #tpu.memory_space<vmem>>, %arg3: memref<1x608xf32, #tpu.memory_space<vmem>>, %arg4: memref<32x32xf32, #tpu.memory_space<vmem>>, %arg5: memref<1x32xf32, #tpu.memory_space<vmem>>, %arg6: memref<1x16x32xf32, #tpu.memory_space<vmem>>) attributes {dimension_semantics = [#tpu.dimension_semantics<parallel>], iteration_bounds = array<i64: 2>, scalar_prefetch = 0 : i64, scratch_operands = 0 : i64, tpu.core_type = #tpu.core_type<tc>, window_params = [{transform_indices = @transform_0, window_bounds = array<i64: 1, 16, 32>}, {pipeline_mode = #tpu.pipeline_mode<synchronous>, transform_indices = @transform_1, window_bounds = array<i64: 608, 32>}, {pipeline_mode = #tpu.pipeline_mode<synchronous>, transform_indices = @transform_2, window_bounds = array<i64: 1, 608>}, {pipeline_mode = #tpu.pipeline_mode<synchronous>, transform_indices = @transform_3, window_bounds = array<i64: 32, 32>}, {pipeline_mode = #tpu.pipeline_mode<synchronous>, transform_indices = @transform_4, window_bounds = array<i64: 1, 32>}, {transform_indices = @transform_5, window_bounds = array<i64: 1, 16, 32>}]} {
    %c0 = arith.constant 0 : index
    %c0_0 = arith.constant 0 : index
    %c0_1 = arith.constant 0 : index
    %0 = vector.load %arg1[%c0, %c0_0, %c0_1] : memref<1x16x32xf32, #tpu.memory_space<vmem>>, vector<1x16x32xf32>
    %1 = vector.shape_cast %0 : vector<1x16x32xf32> to vector<16x32xf32>
    %c0_2 = arith.constant 0 : index
    %c0_3 = arith.constant 0 : index
    %2 = vector.load %arg2[%c0_2, %c0_3] : memref<608x32xf32, #tpu.memory_space<vmem>>, vector<608x32xf32>
    %cst = arith.constant dense<0.000000e+00> : vector<16x608xf32>
    %3 = tpu.matmul %1, %2, %cst {dimension_numbers = #tpu.dot_dimension_numbers<[1], [1], [0], [0], [0, 0, 1, 0], [], []>} : vector<16x32xf32>, vector<608x32xf32>, vector<16x608xf32> -> vector<16x608xf32>
    %c0_4 = arith.constant 0 : index
    %c0_5 = arith.constant 0 : index
    %4 = vector.load %arg3[%c0_4, %c0_5] : memref<1x608xf32, #tpu.memory_space<vmem>>, vector<1x608xf32>
    %5 = vector.broadcast %4 : vector<1x608xf32> to vector<16x608xf32>
    %6 = arith.addf %3, %5 : vector<16x608xf32>
    %7 = vector.extract_strided_slice %6 {offsets = [0, 0], sizes = [16, 256], strides = [1, 1]} : vector<16x608xf32> to vector<16x256xf32>
    %8 = vector.extract_strided_slice %6 {offsets = [0, 256], sizes = [16, 256], strides = [1, 1]} : vector<16x608xf32> to vector<16x256xf32>
    %9 = vector.extract_strided_slice %6 {offsets = [0, 512], sizes = [16, 32], strides = [1, 1]} : vector<16x608xf32> to vector<16x32xf32>
    %10 = vector.extract_strided_slice %6 {offsets = [0, 544], sizes = [16, 32], strides = [1, 1]} : vector<16x608xf32> to vector<16x32xf32>
    %11 = vector.extract_strided_slice %6 {offsets = [0, 576], sizes = [16, 32], strides = [1, 1]} : vector<16x608xf32> to vector<16x32xf32>
    %12 = vector.extract_strided_slice %9 {offsets = [0, 0], sizes = [16, 8], strides = [1, 1]} : vector<16x32xf32> to vector<16x8xf32>
    %13 = vector.extract_strided_slice %10 {offsets = [0, 0], sizes = [16, 8], strides = [1, 1]} : vector<16x32xf32> to vector<16x8xf32>
    %14 = vector.extract_strided_slice %11 {offsets = [0, 0], sizes = [16, 8], strides = [1, 1]} : vector<16x32xf32> to vector<16x8xf32>
    %15 = vector.extract_strided_slice %7 {offsets = [0, 0], sizes = [16, 64], strides = [1, 1]} : vector<16x256xf32> to vector<16x64xf32>
    %16 = vector.extract_strided_slice %8 {offsets = [0, 0], sizes = [16, 64], strides = [1, 1]} : vector<16x256xf32> to vector<16x64xf32>
    %17 = arith.mulf %12, %12 : vector<16x8xf32>
    %cst_6 = arith.constant dense<0.000000e+00> : vector<16xf32>
    %18 = vector.multi_reduction <add>, %17, %cst_6 [1] : vector<16x8xf32> to vector<16xf32>
    %19 = vector.shape_cast %18 : vector<16xf32> to vector<16x1xf32>
    %cst_7 = arith.constant 0.176776692 : f32
    %20 = vector.broadcast %cst_7 : f32 to vector<16x1xf32>
    %21 = arith.mulf %19, %20 : vector<16x1xf32>
    %22 = arith.mulf %13, %13 : vector<16x8xf32>
    %cst_8 = arith.constant dense<0.000000e+00> : vector<16xf32>
    %23 = vector.multi_reduction <add>, %22, %cst_8 [1] : vector<16x8xf32> to vector<16xf32>
    %24 = vector.shape_cast %23 : vector<16xf32> to vector<16x1xf32>
    %cst_9 = arith.constant 0.176776692 : f32
    %25 = vector.broadcast %cst_9 : f32 to vector<16x1xf32>
    %26 = arith.mulf %24, %25 : vector<16x1xf32>
    %cst_10 = arith.constant dense<0xFF800000> : vector<16xf32>
    %27 = vector.multi_reduction <maximumf>, %15, %cst_10 [1] : vector<16x64xf32> to vector<16xf32>
    %28 = vector.shape_cast %27 : vector<16xf32> to vector<16x1xf32>
    %29 = vector.shape_cast %16 : vector<16x64xf32> to vector<1x16x64xf32>
    %cst_11 = arith.constant dense<0xFF800000> : vector<1xf32>
    %30 = vector.multi_reduction <maximumf>, %29, %cst_11 [1, 2] : vector<1x16x64xf32> to vector<1xf32>
    %31 = vector.shape_cast %30 : vector<1xf32> to vector<1x1x1xf32>
    %32 = vector.extract %31[0, 0, 0] : f32 from vector<1x1x1xf32>
    %33 = vector.broadcast %21 : vector<16x1xf32> to vector<16x64xf32>
    %34 = arith.subf %15, %33 : vector<16x64xf32>
    %35 = vector.broadcast %28 : vector<16x1xf32> to vector<16x64xf32>
    %36 = arith.subf %34, %35 : vector<16x64xf32>
    %37 = math.exp %36 : vector<16x64xf32>
    %cst_12 = arith.constant 1.250000e-01 : f32
    %38 = vector.broadcast %cst_12 : f32 to vector<16x64xf32>
    %39 = arith.mulf %38, %37 : vector<16x64xf32>
    %cst_13 = arith.constant 9.99999974E-5 : f32
    %40 = vector.broadcast %cst_13 : f32 to vector<16x64xf32>
    %41 = arith.addf %39, %40 : vector<16x64xf32>
    %42 = vector.broadcast %26 : vector<16x1xf32> to vector<16x64xf32>
    %43 = arith.subf %16, %42 : vector<16x64xf32>
    %44 = vector.broadcast %32 : f32 to vector<16x64xf32>
    %45 = arith.subf %43, %44 : vector<16x64xf32>
    %46 = math.exp %45 : vector<16x64xf32>
    %cst_14 = arith.constant 1.250000e-01 : f32
    %47 = vector.broadcast %cst_14 : f32 to vector<16x64xf32>
    %48 = arith.mulf %47, %46 : vector<16x64xf32>
    %cst_15 = arith.constant 9.99999974E-5 : f32
    %49 = vector.broadcast %cst_15 : f32 to vector<16x64xf32>
    %50 = arith.addf %48, %49 : vector<16x64xf32>
    %cst_16 = arith.constant 1.000000e+00 : f32
    %51 = vector.broadcast %cst_16 : f32 to vector<16x1xf32>
    %52 = tpu.concatenate %14, %51 in 1 : vector<16x8xf32>, vector<16x1xf32> -> vector<16x9xf32>
    %cst_17 = arith.constant dense<0.000000e+00> : vector<64x9xf32>
    %53 = tpu.matmul %50, %52, %cst_17 {dimension_numbers = #tpu.dot_dimension_numbers<[0], [0], [1], [1], [0, 1, 1, 1], [], []>} : vector<16x64xf32>, vector<16x9xf32>, vector<64x9xf32> -> vector<64x9xf32>
    %cst_18 = arith.constant dense<0.000000e+00> : vector<16x9xf32>
    %54 = tpu.matmul %41, %53, %cst_18 {dimension_numbers = #tpu.dot_dimension_numbers<[1], [0], [0], [1], [0, 0, 1, 1], [], []>} : vector<16x64xf32>, vector<64x9xf32>, vector<16x9xf32> -> vector<16x9xf32>
    %55 = vector.extract_strided_slice %54 {offsets = [0, 8], sizes = [16, 1], strides = [1, 1]} : vector<16x9xf32> to vector<16x1xf32>
    %cst_19 = arith.constant 0.00999999977 : f32
    %56 = vector.broadcast %cst_19 : f32 to vector<16x1xf32>
    %57 = arith.maximumf %55, %56 : vector<16x1xf32>
    %58 = vector.extract_strided_slice %54 {offsets = [0, 0], sizes = [16, 8], strides = [1, 1]} : vector<16x9xf32> to vector<16x8xf32>
    %59 = tpu.reciprocal %57 {approx = true} : vector<16x1xf32> -> vector<16x1xf32>
    %60 = vector.broadcast %59 : vector<16x1xf32> to vector<16x8xf32>
    %61 = arith.mulf %58, %60 : vector<16x8xf32>
    %62 = vector.extract_strided_slice %9 {offsets = [0, 8], sizes = [16, 8], strides = [1, 1]} : vector<16x32xf32> to vector<16x8xf32>
    %63 = vector.extract_strided_slice %10 {offsets = [0, 8], sizes = [16, 8], strides = [1, 1]} : vector<16x32xf32> to vector<16x8xf32>
    %64 = vector.extract_strided_slice %11 {offsets = [0, 8], sizes = [16, 8], strides = [1, 1]} : vector<16x32xf32> to vector<16x8xf32>
    %65 = vector.extract_strided_slice %7 {offsets = [0, 64], sizes = [16, 64], strides = [1, 1]} : vector<16x256xf32> to vector<16x64xf32>
    %66 = vector.extract_strided_slice %8 {offsets = [0, 64], sizes = [16, 64], strides = [1, 1]} : vector<16x256xf32> to vector<16x64xf32>
    %67 = arith.mulf %62, %62 : vector<16x8xf32>
    %cst_20 = arith.constant dense<0.000000e+00> : vector<16xf32>
    %68 = vector.multi_reduction <add>, %67, %cst_20 [1] : vector<16x8xf32> to vector<16xf32>
    %69 = vector.shape_cast %68 : vector<16xf32> to vector<16x1xf32>
    %cst_21 = arith.constant 0.176776692 : f32
    %70 = vector.broadcast %cst_21 : f32 to vector<16x1xf32>
    %71 = arith.mulf %69, %70 : vector<16x1xf32>
    %72 = arith.mulf %63, %63 : vector<16x8xf32>
    %cst_22 = arith.constant dense<0.000000e+00> : vector<16xf32>
    %73 = vector.multi_reduction <add>, %72, %cst_22 [1] : vector<16x8xf32> to vector<16xf32>
    %74 = vector.shape_cast %73 : vector<16xf32> to vector<16x1xf32>
    %cst_23 = arith.constant 0.176776692 : f32
    %75 = vector.broadcast %cst_23 : f32 to vector<16x1xf32>
    %76 = arith.mulf %74, %75 : vector<16x1xf32>
    %cst_24 = arith.constant dense<0xFF800000> : vector<16xf32>
    %77 = vector.multi_reduction <maximumf>, %65, %cst_24 [1] : vector<16x64xf32> to vector<16xf32>
    %78 = vector.shape_cast %77 : vector<16xf32> to vector<16x1xf32>
    %79 = vector.shape_cast %66 : vector<16x64xf32> to vector<1x16x64xf32>
    %cst_25 = arith.constant dense<0xFF800000> : vector<1xf32>
    %80 = vector.multi_reduction <maximumf>, %79, %cst_25 [1, 2] : vector<1x16x64xf32> to vector<1xf32>
    %81 = vector.shape_cast %80 : vector<1xf32> to vector<1x1x1xf32>
    %82 = vector.extract %81[0, 0, 0] : f32 from vector<1x1x1xf32>
    %83 = vector.broadcast %71 : vector<16x1xf32> to vector<16x64xf32>
    %84 = arith.subf %65, %83 : vector<16x64xf32>
    %85 = vector.broadcast %78 : vector<16x1xf32> to vector<16x64xf32>
    %86 = arith.subf %84, %85 : vector<16x64xf32>
    %87 = math.exp %86 : vector<16x64xf32>
    %cst_26 = arith.constant 1.250000e-01 : f32
    %88 = vector.broadcast %cst_26 : f32 to vector<16x64xf32>
    %89 = arith.mulf %88, %87 : vector<16x64xf32>
    %cst_27 = arith.constant 9.99999974E-5 : f32
    %90 = vector.broadcast %cst_27 : f32 to vector<16x64xf32>
    %91 = arith.addf %89, %90 : vector<16x64xf32>
    %92 = vector.broadcast %76 : vector<16x1xf32> to vector<16x64xf32>
    %93 = arith.subf %66, %92 : vector<16x64xf32>
    %94 = vector.broadcast %82 : f32 to vector<16x64xf32>
    %95 = arith.subf %93, %94 : vector<16x64xf32>
    %96 = math.exp %95 : vector<16x64xf32>
    %cst_28 = arith.constant 1.250000e-01 : f32
    %97 = vector.broadcast %cst_28 : f32 to vector<16x64xf32>
    %98 = arith.mulf %97, %96 : vector<16x64xf32>
    %cst_29 = arith.constant 9.99999974E-5 : f32
    %99 = vector.broadcast %cst_29 : f32 to vector<16x64xf32>
    %100 = arith.addf %98, %99 : vector<16x64xf32>
    %cst_30 = arith.constant 1.000000e+00 : f32
    %101 = vector.broadcast %cst_30 : f32 to vector<16x1xf32>
    %102 = tpu.concatenate %64, %101 in 1 : vector<16x8xf32>, vector<16x1xf32> -> vector<16x9xf32>
    %cst_31 = arith.constant dense<0.000000e+00> : vector<64x9xf32>
    %103 = tpu.matmul %100, %102, %cst_31 {dimension_numbers = #tpu.dot_dimension_numbers<[0], [0], [1], [1], [0, 1, 1, 1], [], []>} : vector<16x64xf32>, vector<16x9xf32>, vector<64x9xf32> -> vector<64x9xf32>
    %cst_32 = arith.constant dense<0.000000e+00> : vector<16x9xf32>
    %104 = tpu.matmul %91, %103, %cst_32 {dimension_numbers = #tpu.dot_dimension_numbers<[1], [0], [0], [1], [0, 0, 1, 1], [], []>} : vector<16x64xf32>, vector<64x9xf32>, vector<16x9xf32> -> vector<16x9xf32>
    %105 = vector.extract_strided_slice %104 {offsets = [0, 8], sizes = [16, 1], strides = [1, 1]} : vector<16x9xf32> to vector<16x1xf32>
    %cst_33 = arith.constant 0.00999999977 : f32
    %106 = vector.broadcast %cst_33 : f32 to vector<16x1xf32>
    %107 = arith.maximumf %105, %106 : vector<16x1xf32>
    %108 = vector.extract_strided_slice %104 {offsets = [0, 0], sizes = [16, 8], strides = [1, 1]} : vector<16x9xf32> to vector<16x8xf32>
    %109 = tpu.reciprocal %107 {approx = true} : vector<16x1xf32> -> vector<16x1xf32>
    %110 = vector.broadcast %109 : vector<16x1xf32> to vector<16x8xf32>
    %111 = arith.mulf %108, %110 : vector<16x8xf32>
    %112 = vector.extract_strided_slice %9 {offsets = [0, 16], sizes = [16, 8], strides = [1, 1]} : vector<16x32xf32> to vector<16x8xf32>
    %113 = vector.extract_strided_slice %10 {offsets = [0, 16], sizes = [16, 8], strides = [1, 1]} : vector<16x32xf32> to vector<16x8xf32>
    %114 = vector.extract_strided_slice %11 {offsets = [0, 16], sizes = [16, 8], strides = [1, 1]} : vector<16x32xf32> to vector<16x8xf32>
    %115 = vector.extract_strided_slice %7 {offsets = [0, 128], sizes = [16, 64], strides = [1, 1]} : vector<16x256xf32> to vector<16x64xf32>
    %116 = vector.extract_strided_slice %8 {offsets = [0, 128], sizes = [16, 64], strides = [1, 1]} : vector<16x256xf32> to vector<16x64xf32>
    %117 = arith.mulf %112, %112 : vector<16x8xf32>
    %cst_34 = arith.constant dense<0.000000e+00> : vector<16xf32>
    %118 = vector.multi_reduction <add>, %117, %cst_34 [1] : vector<16x8xf32> to vector<16xf32>
    %119 = vector.shape_cast %118 : vector<16xf32> to vector<16x1xf32>
    %cst_35 = arith.constant 0.176776692 : f32
    %120 = vector.broadcast %cst_35 : f32 to vector<16x1xf32>
    %121 = arith.mulf %119, %120 : vector<16x1xf32>
    %122 = arith.mulf %113, %113 : vector<16x8xf32>
    %cst_36 = arith.constant dense<0.000000e+00> : vector<16xf32>
    %123 = vector.multi_reduction <add>, %122, %cst_36 [1] : vector<16x8xf32> to vector<16xf32>
    %124 = vector.shape_cast %123 : vector<16xf32> to vector<16x1xf32>
    %cst_37 = arith.constant 0.176776692 : f32
    %125 = vector.broadcast %cst_37 : f32 to vector<16x1xf32>
    %126 = arith.mulf %124, %125 : vector<16x1xf32>
    %cst_38 = arith.constant dense<0xFF800000> : vector<16xf32>
    %127 = vector.multi_reduction <maximumf>, %115, %cst_38 [1] : vector<16x64xf32> to vector<16xf32>
    %128 = vector.shape_cast %127 : vector<16xf32> to vector<16x1xf32>
    %129 = vector.shape_cast %116 : vector<16x64xf32> to vector<1x16x64xf32>
    %cst_39 = arith.constant dense<0xFF800000> : vector<1xf32>
    %130 = vector.multi_reduction <maximumf>, %129, %cst_39 [1, 2] : vector<1x16x64xf32> to vector<1xf32>
    %131 = vector.shape_cast %130 : vector<1xf32> to vector<1x1x1xf32>
    %132 = vector.extract %131[0, 0, 0] : f32 from vector<1x1x1xf32>
    %133 = vector.broadcast %121 : vector<16x1xf32> to vector<16x64xf32>
    %134 = arith.subf %115, %133 : vector<16x64xf32>
    %135 = vector.broadcast %128 : vector<16x1xf32> to vector<16x64xf32>
    %136 = arith.subf %134, %135 : vector<16x64xf32>
    %137 = math.exp %136 : vector<16x64xf32>
    %cst_40 = arith.constant 1.250000e-01 : f32
    %138 = vector.broadcast %cst_40 : f32 to vector<16x64xf32>
    %139 = arith.mulf %138, %137 : vector<16x64xf32>
    %cst_41 = arith.constant 9.99999974E-5 : f32
    %140 = vector.broadcast %cst_41 : f32 to vector<16x64xf32>
    %141 = arith.addf %139, %140 : vector<16x64xf32>
    %142 = vector.broadcast %126 : vector<16x1xf32> to vector<16x64xf32>
    %143 = arith.subf %116, %142 : vector<16x64xf32>
    %144 = vector.broadcast %132 : f32 to vector<16x64xf32>
    %145 = arith.subf %143, %144 : vector<16x64xf32>
    %146 = math.exp %145 : vector<16x64xf32>
    %cst_42 = arith.constant 1.250000e-01 : f32
    %147 = vector.broadcast %cst_42 : f32 to vector<16x64xf32>
    %148 = arith.mulf %147, %146 : vector<16x64xf32>
    %cst_43 = arith.constant 9.99999974E-5 : f32
    %149 = vector.broadcast %cst_43 : f32 to vector<16x64xf32>
    %150 = arith.addf %148, %149 : vector<16x64xf32>
    %cst_44 = arith.constant 1.000000e+00 : f32
    %151 = vector.broadcast %cst_44 : f32 to vector<16x1xf32>
    %152 = tpu.concatenate %114, %151 in 1 : vector<16x8xf32>, vector<16x1xf32> -> vector<16x9xf32>
    %cst_45 = arith.constant dense<0.000000e+00> : vector<64x9xf32>
    %153 = tpu.matmul %150, %152, %cst_45 {dimension_numbers = #tpu.dot_dimension_numbers<[0], [0], [1], [1], [0, 1, 1, 1], [], []>} : vector<16x64xf32>, vector<16x9xf32>, vector<64x9xf32> -> vector<64x9xf32>
    %cst_46 = arith.constant dense<0.000000e+00> : vector<16x9xf32>
    %154 = tpu.matmul %141, %153, %cst_46 {dimension_numbers = #tpu.dot_dimension_numbers<[1], [0], [0], [1], [0, 0, 1, 1], [], []>} : vector<16x64xf32>, vector<64x9xf32>, vector<16x9xf32> -> vector<16x9xf32>
    %155 = vector.extract_strided_slice %154 {offsets = [0, 8], sizes = [16, 1], strides = [1, 1]} : vector<16x9xf32> to vector<16x1xf32>
    %cst_47 = arith.constant 0.00999999977 : f32
    %156 = vector.broadcast %cst_47 : f32 to vector<16x1xf32>
    %157 = arith.maximumf %155, %156 : vector<16x1xf32>
    %158 = vector.extract_strided_slice %154 {offsets = [0, 0], sizes = [16, 8], strides = [1, 1]} : vector<16x9xf32> to vector<16x8xf32>
    %159 = tpu.reciprocal %157 {approx = true} : vector<16x1xf32> -> vector<16x1xf32>
    %160 = vector.broadcast %159 : vector<16x1xf32> to vector<16x8xf32>
    %161 = arith.mulf %158, %160 : vector<16x8xf32>
    %162 = vector.extract_strided_slice %9 {offsets = [0, 24], sizes = [16, 8], strides = [1, 1]} : vector<16x32xf32> to vector<16x8xf32>
    %163 = vector.extract_strided_slice %10 {offsets = [0, 24], sizes = [16, 8], strides = [1, 1]} : vector<16x32xf32> to vector<16x8xf32>
    %164 = vector.extract_strided_slice %11 {offsets = [0, 24], sizes = [16, 8], strides = [1, 1]} : vector<16x32xf32> to vector<16x8xf32>
    %165 = vector.extract_strided_slice %7 {offsets = [0, 192], sizes = [16, 64], strides = [1, 1]} : vector<16x256xf32> to vector<16x64xf32>
    %166 = vector.extract_strided_slice %8 {offsets = [0, 192], sizes = [16, 64], strides = [1, 1]} : vector<16x256xf32> to vector<16x64xf32>
    %167 = arith.mulf %162, %162 : vector<16x8xf32>
    %cst_48 = arith.constant dense<0.000000e+00> : vector<16xf32>
    %168 = vector.multi_reduction <add>, %167, %cst_48 [1] : vector<16x8xf32> to vector<16xf32>
    %169 = vector.shape_cast %168 : vector<16xf32> to vector<16x1xf32>
    %cst_49 = arith.constant 0.176776692 : f32
    %170 = vector.broadcast %cst_49 : f32 to vector<16x1xf32>
    %171 = arith.mulf %169, %170 : vector<16x1xf32>
    %172 = arith.mulf %163, %163 : vector<16x8xf32>
    %cst_50 = arith.constant dense<0.000000e+00> : vector<16xf32>
    %173 = vector.multi_reduction <add>, %172, %cst_50 [1] : vector<16x8xf32> to vector<16xf32>
    %174 = vector.shape_cast %173 : vector<16xf32> to vector<16x1xf32>
    %cst_51 = arith.constant 0.176776692 : f32
    %175 = vector.broadcast %cst_51 : f32 to vector<16x1xf32>
    %176 = arith.mulf %174, %175 : vector<16x1xf32>
    %cst_52 = arith.constant dense<0xFF800000> : vector<16xf32>
    %177 = vector.multi_reduction <maximumf>, %165, %cst_52 [1] : vector<16x64xf32> to vector<16xf32>
    %178 = vector.shape_cast %177 : vector<16xf32> to vector<16x1xf32>
    %179 = vector.shape_cast %166 : vector<16x64xf32> to vector<1x16x64xf32>
    %cst_53 = arith.constant dense<0xFF800000> : vector<1xf32>
    %180 = vector.multi_reduction <maximumf>, %179, %cst_53 [1, 2] : vector<1x16x64xf32> to vector<1xf32>
    %181 = vector.shape_cast %180 : vector<1xf32> to vector<1x1x1xf32>
    %182 = vector.extract %181[0, 0, 0] : f32 from vector<1x1x1xf32>
    %183 = vector.broadcast %171 : vector<16x1xf32> to vector<16x64xf32>
    %184 = arith.subf %165, %183 : vector<16x64xf32>
    %185 = vector.broadcast %178 : vector<16x1xf32> to vector<16x64xf32>
    %186 = arith.subf %184, %185 : vector<16x64xf32>
    %187 = math.exp %186 : vector<16x64xf32>
    %cst_54 = arith.constant 1.250000e-01 : f32
    %188 = vector.broadcast %cst_54 : f32 to vector<16x64xf32>
    %189 = arith.mulf %188, %187 : vector<16x64xf32>
    %cst_55 = arith.constant 9.99999974E-5 : f32
    %190 = vector.broadcast %cst_55 : f32 to vector<16x64xf32>
    %191 = arith.addf %189, %190 : vector<16x64xf32>
    %192 = vector.broadcast %176 : vector<16x1xf32> to vector<16x64xf32>
    %193 = arith.subf %166, %192 : vector<16x64xf32>
    %194 = vector.broadcast %182 : f32 to vector<16x64xf32>
    %195 = arith.subf %193, %194 : vector<16x64xf32>
    %196 = math.exp %195 : vector<16x64xf32>
    %cst_56 = arith.constant 1.250000e-01 : f32
    %197 = vector.broadcast %cst_56 : f32 to vector<16x64xf32>
    %198 = arith.mulf %197, %196 : vector<16x64xf32>
    %cst_57 = arith.constant 9.99999974E-5 : f32
    %199 = vector.broadcast %cst_57 : f32 to vector<16x64xf32>
    %200 = arith.addf %198, %199 : vector<16x64xf32>
    %cst_58 = arith.constant 1.000000e+00 : f32
    %201 = vector.broadcast %cst_58 : f32 to vector<16x1xf32>
    %202 = tpu.concatenate %164, %201 in 1 : vector<16x8xf32>, vector<16x1xf32> -> vector<16x9xf32>
    %cst_59 = arith.constant dense<0.000000e+00> : vector<64x9xf32>
    %203 = tpu.matmul %200, %202, %cst_59 {dimension_numbers = #tpu.dot_dimension_numbers<[0], [0], [1], [1], [0, 1, 1, 1], [], []>} : vector<16x64xf32>, vector<16x9xf32>, vector<64x9xf32> -> vector<64x9xf32>
    %cst_60 = arith.constant dense<0.000000e+00> : vector<16x9xf32>
    %204 = tpu.matmul %191, %203, %cst_60 {dimension_numbers = #tpu.dot_dimension_numbers<[1], [0], [0], [1], [0, 0, 1, 1], [], []>} : vector<16x64xf32>, vector<64x9xf32>, vector<16x9xf32> -> vector<16x9xf32>
    %205 = vector.extract_strided_slice %204 {offsets = [0, 8], sizes = [16, 1], strides = [1, 1]} : vector<16x9xf32> to vector<16x1xf32>
    %cst_61 = arith.constant 0.00999999977 : f32
    %206 = vector.broadcast %cst_61 : f32 to vector<16x1xf32>
    %207 = arith.maximumf %205, %206 : vector<16x1xf32>
    %208 = vector.extract_strided_slice %204 {offsets = [0, 0], sizes = [16, 8], strides = [1, 1]} : vector<16x9xf32> to vector<16x8xf32>
    %209 = tpu.reciprocal %207 {approx = true} : vector<16x1xf32> -> vector<16x1xf32>
    %210 = vector.broadcast %209 : vector<16x1xf32> to vector<16x8xf32>
    %211 = arith.mulf %208, %210 : vector<16x8xf32>
    %212 = tpu.concatenate %61, %111, %161, %211 in 1 : vector<16x8xf32>, vector<16x8xf32>, vector<16x8xf32>, vector<16x8xf32> -> vector<16x32xf32>
    %c0_62 = arith.constant 0 : index
    %c0_63 = arith.constant 0 : index
    %213 = vector.load %arg4[%c0_62, %c0_63] : memref<32x32xf32, #tpu.memory_space<vmem>>, vector<32x32xf32>
    %cst_64 = arith.constant dense<0.000000e+00> : vector<16x32xf32>
    %214 = tpu.matmul %212, %213, %cst_64 {dimension_numbers = #tpu.dot_dimension_numbers<[1], [1], [0], [0], [0, 0, 1, 0], [], []>} : vector<16x32xf32>, vector<32x32xf32>, vector<16x32xf32> -> vector<16x32xf32>
    %c0_65 = arith.constant 0 : index
    %c0_66 = arith.constant 0 : index
    %215 = vector.load %arg5[%c0_65, %c0_66] : memref<1x32xf32, #tpu.memory_space<vmem>>, vector<1x32xf32>
    %216 = vector.broadcast %215 : vector<1x32xf32> to vector<16x32xf32>
    %217 = arith.addf %214, %216 : vector<16x32xf32>
    %c0_67 = arith.constant 0 : index
    %c0_68 = arith.constant 0 : index
    %c0_69 = arith.constant 0 : index
    %218 = vector.load %arg6[%c0_67, %c0_68, %c0_69] : memref<1x16x32xf32, #tpu.memory_space<vmem>>, vector<1x16x32xf32>
    %219 = vector.shape_cast %218 : vector<1x16x32xf32> to vector<16x32xf32>
    %220 = vector.shape_cast %217 : vector<16x32xf32> to vector<1x16x32xf32>
    tpu.vector_store %arg6[%c0_67, %c0_68, %c0_69], %220 {strides = array<i32>} : memref<1x16x32xf32, #tpu.memory_space<vmem>>, vector<1x16x32xf32>,
    return
  }
  func.func @transform_0(%arg0: i32) -> (i32, i32, i32) {
    %c0_i32 = arith.constant 0 : i32
    %c0_i32_0 = arith.constant 0 : i32
    %c0_i32_1 = arith.constant 0 : i32
    return %arg0, %c0_i32, %c0_i32_0 : i32, i32, i32
  }
  func.func @transform_1(%arg0: i32) -> (i32, i32) {
    %c0_i32 = arith.constant 0 : i32
    %c0_i32_0 = arith.constant 0 : i32
    %c0_i32_1 = arith.constant 0 : i32
    return %c0_i32, %c0_i32_0 : i32, i32
  }
  func.func @transform_2(%arg0: i32) -> (i32, i32) {
    %c0_i32 = arith.constant 0 : i32
    %c0_i32_0 = arith.constant 0 : i32
    %c0_i32_1 = arith.constant 0 : i32
    return %c0_i32, %c0_i32_0 : i32, i32
  }
  func.func @transform_3(%arg0: i32) -> (i32, i32) {
    %c0_i32 = arith.constant 0 : i32
    %c0_i32_0 = arith.constant 0 : i32
    %c0_i32_1 = arith.constant 0 : i32
    return %c0_i32, %c0_i32_0 : i32, i32
  }
  func.func @transform_4(%arg0: i32) -> (i32, i32) {
    %c0_i32 = arith.constant 0 : i32
    %c0_i32_0 = arith.constant 0 : i32
    %c0_i32_1 = arith.constant 0 : i32
    return %c0_i32, %c0_i32_0 : i32, i32
  }
  func.func @transform_5(%arg0: i32) -> (i32, i32, i32) {
    %c0_i32 = arith.constant 0 : i32
    %c0_i32_0 = arith.constant 0 : i32
    %c0_i32_1 = arith.constant 0 : i32
    return %arg0, %c0_i32, %c0_i32_0 : i32, i32, i32
  }
}

</mosaic_0001>

<llo_original>
// kernel: tpu_custom_call.1
$region0: #{tpu_custom_call.1}
  #allocation0 [shape = 'u32[]', space=smem, size = 0x4, offset = 0x4, fixed_abs, tag = 'smem constant byte address 0x4 - core index']
  #allocation1 [shape = 'u32[144,128]{1,0:T(1,128)}', space=vmem, size = 0x12000, scoped, tag = 'internal scratch']
  %s0 = inlined_call_operand.vmem [shape: f32[2,16,32], index: 0, kind: input, shape index: {}]
  %s1 = inlined_call_operand.vmem [shape: f32[608,32], index: 1, kind: input, shape index: {}]
  %s2 = inlined_call_operand.vmem [shape: f32[1,608], index: 2, kind: input, shape index: {}]
  %s3 = inlined_call_operand.vmem [shape: f32[32,32], index: 3, kind: input, shape index: {}]
  %s4 = inlined_call_operand.vmem [shape: f32[1,32], index: 4, kind: input, shape index: {}]
  %s5 = inlined_call_operand.hbm [shape: f32[2,16,32], index: 5, kind: output, shape index: {}]
  %s6 = sld [smem:[#allocation0]]
  $region53: #{tpu_custom_call.1} parent=0
    _
  %s8 = ssub.s32 1, %s6
  %s9 = scalar_select 0, %s8, %s6
  $region1: #{tpu_custom_call.1} parent=0
    #allocation2 [shape = 'u8[16384]{0}', space=vmem, size = 0x4000, scoped, tag = 'output window, operand 0']
    #allocation3 [shape = 's32[2]{0}', space=sflag, size = 0x8, scoped, tag = 'scoped memory for tpu_custom_call.1']
    %10 = vsyncpa [#allocation3], 0
    %s11 = scalar_lea.sflag [#allocation3], 1
    %12 = vsyncpa %s11, 0
    loop: start=0, step=1, limit=4
    $region2: #{tpu_custom_call.1} parent=1 // loop_pre_header
      _
    $region3: #{tpu_custom_call.1} parent=1 // loop_header
      %s14 = sphi 0, %s18
      %p15 = scmp.ge.s32.totalorder %s14, 4
      %s24 = sphi 0, %s26
      %s27 = sphi 0, %s24
      %s28 = sphi 0, %s27
      %s44 = sphi 0, %s28
      %s48 = sphi 0, %s48
      %s50 = sphi 0, %s48
      %s51 = sphi 0, %s50
      %s65 = sphi 0, %s51
      %s69 = sphi 0, %s69
      %s71 = sphi 0, %s69
      %s72 = sphi 0, %s71
      %s86 = sphi 0, %s72
      %s90 = sphi 0, %s90
      %s92 = sphi 0, %s90
      %s93 = sphi 0, %s92
      %s107 = sphi 0, %s93
      %s111 = sphi 0, %s111
      %s113 = sphi 0, %s111
      %s114 = sphi 0, %s113
      %s128 = sphi 0, %s114
      %s134 = sphi 0, %s136
      %s137 = sphi 0, %s134
      %s138 = sphi 0, %s137
      %s154 = sphi 0, %s138
    $region4: #{tpu_custom_call.1} parent=1 // loop_header_branch
      %17 = sbr.rel (%p15) target = $region8
    $region5: #{tpu_custom_call.1} parent=1 // loop_body
      %s19 = ssub.s32 %s14, 1
      %s20 = ssub.s32 %s14, 2
      %s21 = sadd.s32 %s14, 1
      %s22 = ssub.s32 %s14, %s21
      %p23 = scmp.eq.s32.totalorder %s22, 0
      %s25 = sadd.s32 %s24, 1
      %s26 = scalar_select %p23, %s24, %s25
      %p29 = pneg %p23
      %p30 = scmp.eq.s32.totalorder %s14, 1
      %p31 = por %p29, %p30
      %p32 = scmp.ne.s32.totalorder %s24, %s27
      %p33 = scmp.eq.s32.totalorder %s14, 0
      %p34 = por %p32, %p33
      %p35 = scmp.ne.s32.totalorder %s24, %s27
      %p36 = scmp.eq.s32.totalorder %s19, 1
      %p37 = por %p35, %p36
      %p38 = scmp.ne.s32.totalorder %s27, %s28
      %p39 = scmp.eq.s32.totalorder %s19, 0
      %p40 = por %p38, %p39
      %p41 = scmp.ne.s32.totalorder %s27, %s28
      %p42 = scmp.eq.s32.totalorder %s20, 1
      %p43 = por %p41, %p42
      %p45 = scmp.ne.s32.totalorder %s28, %s44
      %p46 = scmp.eq.s32.totalorder %s20, 0
      %p47 = por %p45, %p46
      %s49 = sadd.s32 %s48, 1
      %p52 = scmp.eq.s32.totalorder %s14, 1
      %p53 = scmp.ne.s32.totalorder %s48, %s50
      %p54 = scmp.eq.s32.totalorder %s14, 0
      %p55 = por %p53, %p54
      %p56 = scmp.ne.s32.totalorder %s48, %s50
      %p57 = scmp.eq.s32.totalorder %s19, 1
      %p58 = por %p56, %p57
      %p59 = scmp.ne.s32.totalorder %s50, %s51
      %p60 = scmp.eq.s32.totalorder %s19, 0
      %p61 = por %p59, %p60
      %p62 = scmp.ne.s32.totalorder %s50, %s51
      %p63 = scmp.eq.s32.totalorder %s20, 1
      %p64 = por %p62, %p63
      %p66 = scmp.ne.s32.totalorder %s51, %s65
      %p67 = scmp.eq.s32.totalorder %s20, 0
      %p68 = por %p66, %p67
      %s70 = sadd.s32 %s69, 1
      %p73 = scmp.eq.s32.totalorder %s14, 1
      %p74 = scmp.ne.s32.totalorder %s69, %s71
      %p75 = scmp.eq.s32.totalorder %s14, 0
      %p76 = por %p74, %p75
      %p77 = scmp.ne.s32.totalorder %s69, %s71
      %p78 = scmp.eq.s32.totalorder %s19, 1
      %p79 = por %p77, %p78
      %p80 = scmp.ne.s32.totalorder %s71, %s72
      %p81 = scmp.eq.s32.totalorder %s19, 0
      %p82 = por %p80, %p81
      %p83 = scmp.ne.s32.totalorder %s71, %s72
      %p84 = scmp.eq.s32.totalorder %s20, 1
      %p85 = por %p83, %p84
      %p87 = scmp.ne.s32.totalorder %s72, %s86
      %p88 = scmp.eq.s32.totalorder %s20, 0
      %p89 = por %p87, %p88
      %s91 = sadd.s32 %s90, 1
      %p94 = scmp.eq.s32.totalorder %s14, 1
      %p95 = scmp.ne.s32.totalorder %s90, %s92
      %p96 = scmp.eq.s32.totalorder %s14, 0
      %p97 = por %p95, %p96
      %p98 = scmp.ne.s32.totalorder %s90, %s92
      %p99 = scmp.eq.s32.totalorder %s19, 1
      %p100 = por %p98, %p99
      %p101 = scmp.ne.s32.totalorder %s92, %s93
      %p102 = scmp.eq.s32.totalorder %s19, 0
      %p103 = por %p101, %p102
      %p104 = scmp.ne.s32.totalorder %s92, %s93
      %p105 = scmp.eq.s32.totalorder %s20, 1
      %p106 = por %p104, %p105
      %p108 = scmp.ne.s32.totalorder %s93, %s107
      %p109 = scmp.eq.s32.totalorder %s20, 0
      %p110 = por %p108, %p109
      %s112 = sadd.s32 %s111, 1
      %p115 = scmp.eq.s32.totalorder %s14, 1
      %p116 = scmp.ne.s32.totalorder %s111, %s113
      %p117 = scmp.eq.s32.totalorder %s14, 0
      %p118 = por %p116, %p117
      %p119 = scmp.ne.s32.totalorder %s111, %s113
      %p120 = scmp.eq.s32.totalorder %s19, 1
      %p121 = por %p119, %p120
      %p122 = scmp.ne.s32.totalorder %s113, %s114
      %p123 = scmp.eq.s32.totalorder %s19, 0
      %p124 = por %p122, %p123
      %p125 = scmp.ne.s32.totalorder %s113, %s114
      %p126 = scmp.eq.s32.totalorder %s20, 1
      %p127 = por %p125, %p126
      %p129 = scmp.ne.s32.totalorder %s114, %s128
      %p130 = scmp.eq.s32.totalorder %s20, 0
      %p131 = por %p129, %p130
      %s132 = ssub.s32 %s14, %s21
      %p133 = scmp.eq.s32.totalorder %s132, 0
      %s135 = sadd.s32 %s134, 1
      %s136 = scalar_select %p133, %s134, %s135
      %p139 = pneg %p133
      %p140 = scmp.eq.s32.totalorder %s14, 1
      %p141 = por %p139, %p140
      %p142 = scmp.ne.s32.totalorder %s134, %s137
      %p143 = scmp.eq.s32.totalorder %s14, 0
      %p144 = por %p142, %p143
      %p145 = scmp.ne.s32.totalorder %s134, %s137
      %p146 = scmp.eq.s32.totalorder %s19, 1
      %p147 = por %p145, %p146
      %p148 = scmp.ne.s32.totalorder %s137, %s138
      %p149 = scmp.eq.s32.totalorder %s19, 0
      %p150 = por %p148, %p149
      %p151 = scmp.ne.s32.totalorder %s137, %s138
      %p152 = scmp.eq.s32.totalorder %s20, 1
      %p153 = por %p151, %p152
      %p155 = scmp.ne.s32.totalorder %s138, %s154
      %p156 = scmp.eq.s32.totalorder %s20, 0
      %p157 = por %p155, %p156
      %p158 = scmp.le.s32.totalorder 1, %s14
      %p159 = scmp.lt.s32.totalorder %s14, 3
      %p160 = pnand %p158, %p159
      %p161 = pneg %p160
      // Predicated region
      $region9: #{tpu_custom_call.1} parent=5 // pred_check
        _
      $region10: #{tpu_custom_call.1} parent=5 // pred_check_branch
        %163 = sbr.rel (%p160) target = $region12
      $region11: #{tpu_custom_call.1} parent=5 // pred_region
        %s164 = ssub.s32 %s14, 1
        // Predicated region
        $region13: #{tpu_custom_call.1} parent=11 // pred_check
          %p165 = pneg %p61
        $region14: #{tpu_custom_call.1} parent=11 // pred_check_branch
          %167 = sbr.rel (%p165) target = $region16
        $region15: #{tpu_custom_call.1} parent=11 // pred_region
          _
        $region16: #{tpu_custom_call.1} parent=11 // pred_fallthru
          _
        // Predicated region
        $region17: #{tpu_custom_call.1} parent=11 // pred_check
          %p168 = pneg %p82
        $region18: #{tpu_custom_call.1} parent=11 // pred_check_branch
          %170 = sbr.rel (%p168) target = $region20
        $region19: #{tpu_custom_call.1} parent=11 // pred_region
          _
        $region20: #{tpu_custom_call.1} parent=11 // pred_fallthru
          _
        // Predicated region
        $region21: #{tpu_custom_call.1} parent=11 // pred_check
          %p171 = pneg %p103
        $region22: #{tpu_custom_call.1} parent=11 // pred_check_branch
          %173 = sbr.rel (%p171) target = $region24
        $region23: #{tpu_custom_call.1} parent=11 // pred_region
          _
        $region24: #{tpu_custom_call.1} parent=11 // pred_fallthru
          _
        // Predicated region
        $region25: #{tpu_custom_call.1} parent=11 // pred_check
          %p174 = pneg %p124
        $region26: #{tpu_custom_call.1} parent=11 // pred_check_branch
          %176 = sbr.rel (%p174) target = $region28
        $region27: #{tpu_custom_call.1} parent=11 // pred_region
          _
        $region28: #{tpu_custom_call.1} parent=11 // pred_fallthru
          _
      $region12: #{tpu_custom_call.1} parent=5 // pred_fallthru
        _
      %p177 = scmp.lt.s32.totalorder %s14, 2
      // Predicated region
      $region29: #{tpu_custom_call.1} parent=5 // pred_check
        %p178 = pneg %p177
      $region30: #{tpu_custom_call.1} parent=5 // pred_check_branch
        %180 = sbr.rel (%p178) target = $region32
      $region31: #{tpu_custom_call.1} parent=5 // pred_region
        // Predicated region
        $region33: #{tpu_custom_call.1} parent=31 // pred_check
          %p181 = pneg %p34
        $region34: #{tpu_custom_call.1} parent=31 // pred_check_branch
          %183 = sbr.rel (%p181) target = $region36
        $region35: #{tpu_custom_call.1} parent=31 // pred_region
          %p184 = scmp.lt.s32.totalorder %s14, 1
          %s185 = scalar_select %p184, %s14, 1
          %s186 = smul.addr %s185, 2
          %s187 = smul.addr %s186, 8
          %s188 = scalar_lea.vmem %s0, %s187
        $region36: #{tpu_custom_call.1} parent=31 // pred_fallthru
          _
      $region32: #{tpu_custom_call.1} parent=5 // pred_fallthru
        _
      %p189 = scmp.le.s32.totalorder 1, %s14
      %p190 = scmp.lt.s32.totalorder %s14, 3
      %p191 = pnand %p189, %p190
      %p192 = pneg %p191
      // Predicated region
      $region37: #{tpu_custom_call.1} parent=5 // pred_check
        _
      $region38: #{tpu_custom_call.1} parent=5 // pred_check_branch
        %194 = sbr.rel (%p191) target = $region40
      $region39: #{tpu_custom_call.1} parent=5 // pred_region
        %s195 = ssub.s32 %s14, 1
        %p196 = scmp.lt.s32.totalorder %s19, 1
        %s197 = scalar_select %p196, %s19, 1
        %s198 = smul.addr %s197, 2
        %s199 = smul.addr %s198, 8
        %s200 = scalar_lea.vmem %s0, %s199
        %p201 = pneg %p40
        %p202 = pneg %p37
        %p203 = pneg %p61
        %p204 = pneg %p58
        %p205 = pneg %p82
        %p206 = pneg %p79
        %p207 = pneg %p103
        %p208 = pneg %p100
        %p209 = pneg %p124
        %p210 = pneg %p121
        %p211 = pneg %p150
        %p212 = pneg %p147
        %s213 = sand.u32 %s137, 1
        %s214 = scalar_lea.sflag [#allocation3], %s213
        %s215 = sand.u32 %s137, 1
        %s216 = smul.addr %s215, 16
        %s217 = scalar_lea.vmem [#allocation2], %s216
        %p218 = scmp.lt.s32.totalorder %s19, 1
        %s219 = scalar_select %p218, %s19, 1
        %s220 = smul.addr %s219, 2
        %s221 = smul.addr %s220, 8
        %s222 = scalar_lea.vmem %s0, %s221
        %v223 = vld [vmem:[%s222] sm:$0xff]
        %v224 = vld [vmem:[%s222 + $0x8] sm:$0xff]
        %v225 = vld [vmem:[%s1] sm:$0xff]
        %v226 = vld [vmem:[%s1 + $0x8] sm:$0xff]
        %v227 = vld [vmem:[%s1 + $0x10] sm:$0xff]
        %v228 = vld [vmem:[%s1 + $0x18] sm:$0xff]
        %v229 = vld [vmem:[%s1 + $0x20] sm:$0xff]
        %v230 = vld [vmem:[%s1 + $0x28] sm:$0xff]
        %v231 = vld [vmem:[%s1 + $0x30] sm:$0xff]
        %v232 = vld [vmem:[%s1 + $0x38] sm:$0xff]
        %v233 = vld [vmem:[%s1 + $0x40] sm:$0xff]
        %v234 = vld [vmem:[%s1 + $0x48] sm:$0xff]
        %v235 = vld [vmem:[%s1 + $0x50] sm:$0xff]
        %v236 = vld [vmem:[%s1 + $0x58] sm:$0xff]
        %v237 = vld [vmem:[%s1 + $0x60] sm:$0xff]
        %v238 = vld [vmem:[%s1 + $0x68] sm:$0xff]
        %v239 = vld [vmem:[%s1 + $0x70] sm:$0xff]
        %v240 = vld [vmem:[%s1 + $0x78] sm:$0xff]
        %v241 = vld [vmem:[%s1 + $0x80] sm:$0xff]
        %v242 = vld [vmem:[%s1 + $0x88] sm:$0xff]
        %v243 = vld [vmem:[%s1 + $0x90] sm:$0xff]
        %v244 = vld [vmem:[%s1 + $0x98] sm:$0xff]
        %v245 = vld [vmem:[%s1 + $0xa0] sm:$0xff]
        %v246 = vld [vmem:[%s1 + $0xa8] sm:$0xff]
        %v247 = vld [vmem:[%s1 + $0xb0] sm:$0xff]
        %v248 = vld [vmem:[%s1 + $0xb8] sm:$0xff]
        %v249 = vld [vmem:[%s1 + $0xc0] sm:$0xff]
        %v250 = vld [vmem:[%s1 + $0xc8] sm:$0xff]
        %v251 = vld [vmem:[%s1 + $0xd0] sm:$0xff]
        %v252 = vld [vmem:[%s1 + $0xd8] sm:$0xff]
        %v253 = vld [vmem:[%s1 + $0xe0] sm:$0xff]
        %v254 = vld [vmem:[%s1 + $0xe8] sm:$0xff]
        %v255 = vld [vmem:[%s1 + $0xf0] sm:$0xff]
        %v256 = vld [vmem:[%s1 + $0xf8] sm:$0xff]
        %v257 = vld [vmem:[%s1 + $0x100] sm:$0xff]
        %v258 = vld [vmem:[%s1 + $0x108] sm:$0xff]
        %v259 = vld [vmem:[%s1 + $0x110] sm:$0xff]
        %v260 = vld [vmem:[%s1 + $0x118] sm:$0xff]
        %v261 = vld [vmem:[%s1 + $0x120] sm:$0xff]
        %v262 = vld [vmem:[%s1 + $0x128] sm:$0xff]
        %v263 = vld [vmem:[%s1 + $0x130] sm:$0xff]
        %v264 = vld [vmem:[%s1 + $0x138] sm:$0xff]
        %v265 = vld [vmem:[%s1 + $0x140] sm:$0xff]
        %v266 = vld [vmem:[%s1 + $0x148] sm:$0xff]
        %v267 = vld [vmem:[%s1 + $0x150] sm:$0xff]
        %v268 = vld [vmem:[%s1 + $0x158] sm:$0xff]
        %v269 = vld [vmem:[%s1 + $0x160] sm:$0xff]
        %v270 = vld [vmem:[%s1 + $0x168] sm:$0xff]
        %v271 = vld [vmem:[%s1 + $0x170] sm:$0xff]
        %v272 = vld [vmem:[%s1 + $0x178] sm:$0xff]
        %v273 = vld [vmem:[%s1 + $0x180] sm:$0xff]
        %v274 = vld [vmem:[%s1 + $0x188] sm:$0xff]
        %v275 = vld [vmem:[%s1 + $0x190] sm:$0xff]
        %v276 = vld [vmem:[%s1 + $0x198] sm:$0xff]
        %v277 = vld [vmem:[%s1 + $0x1a0] sm:$0xff]
        %v278 = vld [vmem:[%s1 + $0x1a8] sm:$0xff]
        %v279 = vld [vmem:[%s1 + $0x1b0] sm:$0xff]
        %v280 = vld [vmem:[%s1 + $0x1b8] sm:$0xff]
        %v281 = vld [vmem:[%s1 + $0x1c0] sm:$0xff]
        %v282 = vld [vmem:[%s1 + $0x1c8] sm:$0xff]
        %v283 = vld [vmem:[%s1 + $0x1d0] sm:$0xff]
        %v284 = vld [vmem:[%s1 + $0x1d8] sm:$0xff]
        %v285 = vld [vmem:[%s1 + $0x1e0] sm:$0xff]
        %v286 = vld [vmem:[%s1 + $0x1e8] sm:$0xff]
        %v287 = vld [vmem:[%s1 + $0x1f0] sm:$0xff]
        %v288 = vld [vmem:[%s1 + $0x1f8] sm:$0xff]
        %v289 = vld [vmem:[%s1 + $0x200] sm:$0xff]
        %v290 = vld [vmem:[%s1 + $0x208] sm:$0xff]
        %v291 = vld [vmem:[%s1 + $0x210] sm:$0xff]
        %v292 = vld [vmem:[%s1 + $0x218] sm:$0xff]
        %v293 = vld [vmem:[%s1 + $0x220] sm:$0xff]
        %v294 = vld [vmem:[%s1 + $0x228] sm:$0xff]
        %v295 = vld [vmem:[%s1 + $0x230] sm:$0xff]
        %v296 = vld [vmem:[%s1 + $0x238] sm:$0xff]
        %v297 = vld [vmem:[%s1 + $0x240] sm:$0xff]
        %v298 = vld [vmem:[%s1 + $0x248] sm:$0xff]
        %v299 = vld [vmem:[%s1 + $0x250] sm:$0xff]
        %v300 = vld [vmem:[%s1 + $0x258] sm:$0xff]
        %v301 = vld [vmem:[%s2] sm:$0x1f]
        %v303 = vlaneseq
        %v304 = vshrl.u32 %v303, 7
        %v305 = vsub.s32 0, %v304
        %v306 = vrot.slane %v301, %v305
        %v307 = vlaneseq
        %v308 = vshrl.u32 %v307, 7
        %v309 = vsub.s32 1, %v308
        %v310 = vrot.slane %v301, %v309
        %v311 = vlaneseq
        %v312 = vshrl.u32 %v311, 7
        %v313 = vsub.s32 2, %v312
        %v314 = vrot.slane %v301, %v313
        %v315 = vlaneseq
        %v316 = vshrl.u32 %v315, 7
        %v317 = vsub.s32 3, %v316
        %v318 = vrot.slane %v301, %v317
        %v319 = vlaneseq
        %v320 = vshrl.u32 %v319, 7
        %v321 = vsub.s32 4, %v320
        %v322 = vrot.slane %v301, %v321
        %vm328 = vcmask 261120
        %v330 = vsel %vm328, %v223, 0
        %v333 = vsel %vm328, %v224, 0
        %v336 = vsel %vm328, %v225, 0
        %v339 = vsel %vm328, %v226, 0
        %v342 = vsel %vm328, %v227, 0
        %v345 = vsel %vm328, %v228, 0
        %v348 = vsel %vm328, %v229, 0
        %v351 = vsel %vm328, %v230, 0
        %v354 = vsel %vm328, %v231, 0
        %v357 = vsel %vm328, %v232, 0
        %v360 = vsel %vm328, %v233, 0
        %v363 = vsel %vm328, %v234, 0
        %v366 = vsel %vm328, %v235, 0
        %v369 = vsel %vm328, %v236, 0
        %v372 = vsel %vm328, %v237, 0
        %v375 = vsel %vm328, %v238, 0
        %v378 = vsel %vm328, %v239, 0
        %v381 = vsel %vm328, %v240, 0
        %v384 = vsel %vm328, %v241, 0
        %v387 = vsel %vm328, %v242, 0
        %v390 = vsel %vm328, %v243, 0
        %v393 = vsel %vm328, %v244, 0
        %v396 = vsel %vm328, %v245, 0
        %v399 = vsel %vm328, %v246, 0
        %v402 = vsel %vm328, %v247, 0
        %v405 = vsel %vm328, %v248, 0
        %v408 = vsel %vm328, %v249, 0
        %v411 = vsel %vm328, %v250, 0
        %v414 = vsel %vm328, %v251, 0
        %v417 = vsel %vm328, %v252, 0
        %v420 = vsel %vm328, %v253, 0
        %v423 = vsel %vm328, %v254, 0
        %v426 = vsel %vm328, %v255, 0
        %v429 = vsel %vm328, %v256, 0
        %v432 = vsel %vm328, %v257, 0
        %v435 = vsel %vm328, %v258, 0
        %v438 = vsel %vm328, %v259, 0
        %v441 = vsel %vm328, %v260, 0
        %v444 = vsel %vm328, %v261, 0
        %v447 = vsel %vm328, %v262, 0
        %v450 = vsel %vm328, %v263, 0
        %v453 = vsel %vm328, %v264, 0
        %v456 = vsel %vm328, %v265, 0
        %v459 = vsel %vm328, %v266, 0
        %v462 = vsel %vm328, %v267, 0
        %v465 = vsel %vm328, %v268, 0
        %v468 = vsel %vm328, %v269, 0
        %v471 = vsel %vm328, %v270, 0
        %v474 = vsel %vm328, %v271, 0
        %v477 = vsel %vm328, %v272, 0
        %v480 = vsel %vm328, %v273, 0
        %v483 = vsel %vm328, %v274, 0
        %v486 = vsel %vm328, %v275, 0
        %v489 = vsel %vm328, %v276, 0
        %v492 = vsel %vm328, %v277, 0
        %v495 = vsel %vm328, %v278, 0
        %v498 = vsel %vm328, %v279, 0
        %v501 = vsel %vm328, %v280, 0
        %v504 = vsel %vm328, %v281, 0
        %v507 = vsel %vm328, %v282, 0
        %v510 = vsel %vm328, %v283, 0
        %v513 = vsel %vm328, %v284, 0
        %v516 = vsel %vm328, %v285, 0
        %v519 = vsel %vm328, %v286, 0
        %v522 = vsel %vm328, %v287, 0
        %v525 = vsel %vm328, %v288, 0
        %v528 = vsel %vm328, %v289, 0
        %v531 = vsel %vm328, %v290, 0
        %v534 = vsel %vm328, %v291, 0
        %v537 = vsel %vm328, %v292, 0
        %v540 = vsel %vm328, %v293, 0
        %v543 = vsel %vm328, %v294, 0
        %v546 = vsel %vm328, %v295, 0
        %v549 = vsel %vm328, %v296, 0
        %v552 = vsel %vm328, %v297, 0
        %v555 = vsel %vm328, %v298, 0
        %v558 = vsel %vm328, %v299, 0
        %v561 = vsel %vm328, %v300, 0
        %563 = vmatprep.subr.mxu0 0.0
        %564 = vmatpush1.xpose.msra.mxu0 %v336
        %565 = vmatprep.subr.mxu0 0.0
        %566 = vmatpush1.xpose.msra.mxu0 %v339
        %567 = vmatprep.subr.mxu0 0.0
        %568 = vmatpush1.xpose.msra.mxu0 %v342
        %569 = vmatprep.subr.mxu0 0.0
        %570 = vmatpush1.xpose.msra.mxu0 %v345
        %571 = vmatprep.subr.mxu0 0.0
        %572 = vmatpush1.xpose.msra.mxu0 %v348
        %573 = vmatprep.subr.mxu0 0.0
        %574 = vmatpush1.xpose.msra.mxu0 %v351
        %575 = vmatprep.subr.mxu0 0.0
        %576 = vmatpush1.xpose.msra.mxu0 %v354
        %577 = vmatprep.subr.mxu0 0.0
        %578 = vmatpush1.xpose.msra.mxu0 %v357
        %579 = vmatprep.subr.mxu0 0.0
        %580 = vmatpush1.xpose.msra.mxu0 %v360
        %581 = vmatprep.subr.mxu0 0.0
        %582 = vmatpush1.xpose.msra.mxu0 %v363
        %583 = vmatprep.subr.mxu0 0.0
        %584 = vmatpush1.xpose.msra.mxu0 %v366
        %585 = vmatprep.subr.mxu0 0.0
        %586 = vmatpush1.xpose.msra.mxu0 %v369
        %587 = vmatprep.subr.mxu0 0.0
        %588 = vmatpush1.xpose.msra.mxu0 %v372
        %589 = vmatprep.subr.mxu0 0.0
        %590 = vmatpush1.xpose.msra.mxu0 %v375
        %591 = vmatprep.subr.mxu0 0.0
        %592 = vmatpush1.xpose.msra.mxu0 %v378
        %593 = vmatprep.subr.mxu0 0.0
        %594 = vmatpush1.xpose.msra.mxu0 %v381
        %595 = vmatprep.subr.mxu0 0.0
        %596 = vmatpush1.xpose.msra.mxu0 %v384
        %597 = vmatprep.subr.mxu0 0.0
        %598 = vmatpush1.xpose.msra.mxu0 %v387
        %599 = vmatprep.subr.mxu0 0.0
        %600 = vmatpush1.xpose.msra.mxu0 %v390
        %601 = vmatprep.subr.mxu0 0.0
        %602 = vmatpush1.xpose.msra.mxu0 %v393
        %603 = vmatprep.subr.mxu0 0.0
        %604 = vmatpush1.xpose.msra.mxu0 %v396
        %605 = vmatprep.subr.mxu0 0.0
        %606 = vmatpush1.xpose.msra.mxu0 %v399
        %607 = vmatprep.subr.mxu0 0.0
        %608 = vmatpush1.xpose.msra.mxu0 %v402
        %609 = vmatprep.subr.mxu0 0.0
        %610 = vmatpush1.xpose.msra.mxu0 %v405
        %611 = vmatprep.subr.mxu0 0.0
        %612 = vmatpush1.xpose.msra.mxu0 %v408
        %613 = vmatprep.subr.mxu0 0.0
        %614 = vmatpush1.xpose.msra.mxu0 %v411
        %615 = vmatprep.subr.mxu0 0.0
        %616 = vmatpush1.xpose.msra.mxu0 %v414
        %617 = vmatprep.subr.mxu0 0.0
        %618 = vmatpush1.xpose.msra.mxu0 %v417
        %619 = vmatprep.subr.mxu0 0.0
        %620 = vmatpush1.xpose.msra.mxu0 %v420
        %621 = vmatprep.subr.mxu0 0.0
        %622 = vmatpush1.xpose.msra.mxu0 %v423
        %623 = vmatprep.subr.mxu0 0.0
        %624 = vmatpush1.xpose.msra.mxu0 %v426
        %625 = vmatprep.subr.mxu0 0.0
        %626 = vmatpush1.xpose.msra.mxu0 %v429
        %627 = vmatprep.mubr.f32.mxu0 0.0
        %628 = vmatmul.mubr.f32.gmra.mrb[0].mxu0 %v330
        %v629 = vpop.f32.mrb[0].mxu0
        %v630 = vadd.f32 %v306, %v629
        %v631 = vpop.f32.mrb[0].mxu0
        %v632 = vadd.f32 %v310, %v631
        %633 = vmatprep.mubr.f32.mxu0 0.0
        %634 = vmatmul.mubr.f32.gmra.mrb[0].mxu0 %v333
        %v635 = vpop.f32.mrb[0].mxu0
        %v636 = vadd.f32 %v306, %v635
        %v637 = vpop.f32.mrb[0].mxu0
        %v638 = vadd.f32 %v310, %v637
        %639 = vdwg.mxu0
        %640 = vmatprep.subr.mxu0 0.0
        %641 = vmatpush1.xpose.msra.mxu0 %v432
        %642 = vmatprep.subr.mxu0 0.0
        %643 = vmatpush1.xpose.msra.mxu0 %v435
        %644 = vmatprep.subr.mxu0 0.0
        %645 = vmatpush1.xpose.msra.mxu0 %v438
        %646 = vmatprep.subr.mxu0 0.0
        %647 = vmatpush1.xpose.msra.mxu0 %v441
        %648 = vmatprep.subr.mxu0 0.0
        %649 = vmatpush1.xpose.msra.mxu0 %v444
        %650 = vmatprep.subr.mxu0 0.0
        %651 = vmatpush1.xpose.msra.mxu0 %v447
        %652 = vmatprep.subr.mxu0 0.0
        %653 = vmatpush1.xpose.msra.mxu0 %v450
        %654 = vmatprep.subr.mxu0 0.0
        %655 = vmatpush1.xpose.msra.mxu0 %v453
        %656 = vmatprep.subr.mxu0 0.0
        %657 = vmatpush1.xpose.msra.mxu0 %v456
        %658 = vmatprep.subr.mxu0 0.0
        %659 = vmatpush1.xpose.msra.mxu0 %v459
        %660 = vmatprep.subr.mxu0 0.0
        %661 = vmatpush1.xpose.msra.mxu0 %v462
        %662 = vmatprep.subr.mxu0 0.0
        %663 = vmatpush1.xpose.msra.mxu0 %v465
        %664 = vmatprep.subr.mxu0 0.0
        %665 = vmatpush1.xpose.msra.mxu0 %v468
        %666 = vmatprep.subr.mxu0 0.0
        %667 = vmatpush1.xpose.msra.mxu0 %v471
        %668 = vmatprep.subr.mxu0 0.0
        %669 = vmatpush1.xpose.msra.mxu0 %v474
        %670 = vmatprep.subr.mxu0 0.0
        %671 = vmatpush1.xpose.msra.mxu0 %v477
        %672 = vmatprep.subr.mxu0 0.0
        %673 = vmatpush1.xpose.msra.mxu0 %v480
        %674 = vmatprep.subr.mxu0 0.0
        %675 = vmatpush1.xpose.msra.mxu0 %v483
        %676 = vmatprep.subr.mxu0 0.0
        %677 = vmatpush1.xpose.msra.mxu0 %v486
        %678 = vmatprep.subr.mxu0 0.0
        %679 = vmatpush1.xpose.msra.mxu0 %v489
        %680 = vmatprep.subr.mxu0 0.0
        %681 = vmatpush1.xpose.msra.mxu0 %v492
        %682 = vmatprep.subr.mxu0 0.0
        %683 = vmatpush1.xpose.msra.mxu0 %v495
        %684 = vmatprep.subr.mxu0 0.0
        %685 = vmatpush1.xpose.msra.mxu0 %v498
        %686 = vmatprep.subr.mxu0 0.0
        %687 = vmatpush1.xpose.msra.mxu0 %v501
        %688 = vmatprep.subr.mxu0 0.0
        %689 = vmatpush1.xpose.msra.mxu0 %v504
        %690 = vmatprep.subr.mxu0 0.0
        %691 = vmatpush1.xpose.msra.mxu0 %v507
        %692 = vmatprep.subr.mxu0 0.0
        %693 = vmatpush1.xpose.msra.mxu0 %v510
        %694 = vmatprep.subr.mxu0 0.0
        %695 = vmatpush1.xpose.msra.mxu0 %v513
        %696 = vmatprep.subr.mxu0 0.0
        %697 = vmatpush1.xpose.msra.mxu0 %v516
        %698 = vmatprep.subr.mxu0 0.0
        %699 = vmatpush1.xpose.msra.mxu0 %v519
        %700 = vmatprep.subr.mxu0 0.0
        %701 = vmatpush1.xpose.msra.mxu0 %v522
        %702 = vmatprep.subr.mxu0 0.0
        %703 = vmatpush1.xpose.msra.mxu0 %v525
        %704 = vmatprep.mubr.f32.mxu0 0.0
        %705 = vmatmul.mubr.f32.gmra.mrb[0].mxu0 %v330
        %v706 = vpop.f32.mrb[0].mxu0
        %v707 = vadd.f32 %v314, %v706
        %v708 = vpop.f32.mrb[0].mxu0
        %v709 = vadd.f32 %v318, %v708
        %710 = vmatprep.mubr.f32.mxu0 0.0
        %711 = vmatmul.mubr.f32.gmra.mrb[0].mxu0 %v333
        %v712 = vpop.f32.mrb[0].mxu0
        %v713 = vadd.f32 %v314, %v712
        %v714 = vpop.f32.mrb[0].mxu0
        %v715 = vadd.f32 %v318, %v714
        %716 = vdwg.mxu0
        %717 = vmatprep.subr.mxu0 0.0
        %718 = vmatpush1.xpose.msra.mxu0 %v528
        %719 = vmatprep.subr.mxu0 0.0
        %720 = vmatpush1.xpose.msra.mxu0 %v531
        %721 = vmatprep.subr.mxu0 0.0
        %722 = vmatpush1.xpose.msra.mxu0 %v534
        %723 = vmatprep.subr.mxu0 0.0
        %724 = vmatpush1.xpose.msra.mxu0 %v537
        %725 = vmatprep.subr.mxu0 0.0
        %726 = vmatpush1.xpose.msra.mxu0 %v540
        %727 = vmatprep.subr.mxu0 0.0
        %728 = vmatpush1.xpose.msra.mxu0 %v543
        %729 = vmatprep.subr.mxu0 0.0
        %730 = vmatpush1.xpose.msra.mxu0 %v546
        %731 = vmatprep.subr.mxu0 0.0
        %732 = vmatpush1.xpose.msra.mxu0 %v549
        %733 = vmatprep.subr.mxu0 0.0
        %734 = vmatpush1.xpose.msra.mxu0 %v552
        %735 = vmatprep.subr.mxu0 0.0
        %736 = vmatpush1.xpose.msra.mxu0 %v555
        %737 = vmatprep.subr.mxu0 0.0
        %738 = vmatpush1.xpose.msra.mxu0 %v558
        %739 = vmatprep.subr.mxu0 0.0
        %740 = vmatpush1.xpose.msra.mxu0 %v561
        %741 = vmatprep.subr.mxu0 0.0
        %742 = vmatpush1.xpose.msra.mxu0 0.0
        %743 = vmatprep.subr.mxu0 0.0
        %744 = vmatpush1.xpose.msra.mxu0 0.0
        %745 = vmatprep.subr.mxu0 0.0
        %746 = vmatpush1.xpose.msra.mxu0 0.0
        %747 = vmatprep.subr.mxu0 0.0
        %748 = vmatpush1.xpose.msra.mxu0 0.0
        %749 = vmatprep.subr.mxu0 0.0
        %750 = vmatpush1.xpose.msra.mxu0 0.0
        %751 = vmatprep.subr.mxu0 0.0
        %752 = vmatpush1.xpose.msra.mxu0 0.0
        %753 = vmatprep.subr.mxu0 0.0
        %754 = vmatpush1.xpose.msra.mxu0 0.0
        %755 = vmatprep.subr.mxu0 0.0
        %756 = vmatpush1.xpose.msra.mxu0 0.0
        %757 = vmatprep.subr.mxu0 0.0
        %758 = vmatpush1.xpose.msra.mxu0 0.0
        %759 = vmatprep.subr.mxu0 0.0
        %760 = vmatpush1.xpose.msra.mxu0 0.0
        %761 = vmatprep.subr.mxu0 0.0
        %762 = vmatpush1.xpose.msra.mxu0 0.0
        %763 = vmatprep.subr.mxu0 0.0
        %764 = vmatpush1.xpose.msra.mxu0 0.0
        %765 = vmatprep.subr.mxu0 0.0
        %766 = vmatpush1.xpose.msra.mxu0 0.0
        %767 = vmatprep.subr.mxu0 0.0
        %768 = vmatpush1.xpose.msra.mxu0 0.0
        %769 = vmatprep.subr.mxu0 0.0
        %770 = vmatpush1.xpose.msra.mxu0 0.0
        %771 = vmatprep.subr.mxu0 0.0
        %772 = vmatpush1.xpose.msra.mxu0 0.0
        %773 = vmatprep.subr.mxu0 0.0
        %774 = vmatpush1.xpose.msra.mxu0 0.0
        %775 = vmatprep.subr.mxu0 0.0
        %776 = vmatpush1.xpose.msra.mxu0 0.0
        %777 = vmatprep.subr.mxu0 0.0
        %778 = vmatpush1.xpose.msra.mxu0 0.0
        %779 = vmatprep.subr.mxu0 0.0
        %780 = vmatpush1.xpose.msra.mxu0 0.0
        %781 = vmatprep.mubr.f32.mxu0 0.0
        %782 = vmatmul.mubr.f32.gmra.mrb[0].mxu0 %v330
        %v783 = vpop.f32.mrb[0].mxu0
        %v784 = vadd.f32 %v322, %v783
        %v785 = vpop.f32.mrb[0].mxu0
        %786 = vmatprep.mubr.f32.mxu0 0.0
        %787 = vmatmul.mubr.f32.gmra.mrb[0].mxu0 %v333
        %v788 = vpop.f32.mrb[0].mxu0
        %v789 = vadd.f32 %v322, %v788
        %v790 = vpop.f32.mrb[0].mxu0
        %791 = vdwg.mxu0
        %v792 = vmul.f32 %v784, %v784
        %v793 = vmul.f32 %v789, %v789
        %vm794 = vcmask 64512
        %v795 = vsel %vm794, %v792, 0.0
        %796 = vadd.xlane.f32.xlu0 %v795
        %v797 = vpop.xlane.xlu0 %796
        %v798 = vsel %vm794, %v793, 0.0
        %799 = vadd.xlane.f32.xlu0 %v798
        %v800 = vpop.xlane.xlu0 %799
        %v801 = vmul.f32 %v797, 0.17677669
        %v802 = vmul.f32 %v800, 0.17677669
        %805 = vrot.lane.b32.xlu0 %v792, 96
        %v806 = vpop.permute.xlu0 %805
        %807 = vrot.lane.b32.xlu0 %v793, 96
        %v808 = vpop.permute.xlu0 %807
        %v811 = vsel %vm794, %v806, 0.0
        %812 = vadd.xlane.f32.xlu0 %v811
        %v813 = vpop.xlane.xlu0 %812
        %v814 = vsel %vm794, %v808, 0.0
        %815 = vadd.xlane.f32.xlu0 %v814
        %v816 = vpop.xlane.xlu0 %815
        %v817 = vmul.f32 %v813, 0.17677669
        %v818 = vmul.f32 %v816, 0.17677669
        %vm819 = vcmask 523264
        %v820 = vsel %vm819, %v630, -inf
        %821 = vmax.xlane.f32.xlu0 %v820
        %v822 = vpop.xlane.xlu0 %821
        %v823 = vsel %vm819, %v636, -inf
        %824 = vmax.xlane.f32.xlu0 %v823
        %v825 = vpop.xlane.xlu0 %824
        %v826 = vsel %vm819, %v707, -inf
        %v827 = vsel %vm819, %v713, -inf
        %v828 = vmax.f32 %v826, %v827
        %829 = vmax.xlane.f32.xlu0 %v828
        %v830 = vpop.xlane.xlu0 %829
        %v831 = vrot.slane %v830, 4
        %v832 = vmax.f32 %v830, %v831
        %v833 = vrot.slane %v832, 2
        %v834 = vmax.f32 %v832, %v833
        %v835 = vrot.slane %v834, 1
        %v836 = vmax.f32 %v834, %v835
        %s837 = vtos %v836
        %v838 = vsub.f32 %v630, %v801
        %v839 = vsub.f32 %v636, %v802
        %v840 = vsub.f32 %v838, %v822
        %v841 = vsub.f32 %v839, %v825
        %v842 = vmul.f32 %v840, 1.442695
        %v843 = vpow.pop %v842
        %v844 = vmul.f32 %v841, 1.442695
        %v845 = vpow.pop %v844
        %v846 = vmul.f32 %v843, 0.125
        %v847 = vmul.f32 %v845, 0.125
        %v848 = vadd.f32 %v846, 0.0001
        %v849 = vadd.f32 %v847, 0.0001
        %v850 = vsub.f32 %v707, %v817
        %v851 = vsub.f32 %v713, %v818
        %v852 = vstv %s837
        %v853 = vsub.f32 %v850, %v852
        %v854 = vsub.f32 %v851, %v852
        %v855 = vmul.f32 %v853, 1.442695
        %v856 = vpow.pop %v855
        %v857 = vmul.f32 %v854, 1.442695
        %v858 = vpow.pop %v857
        %v859 = vmul.f32 %v856, 0.125
        %v860 = vmul.f32 %v858, 0.125
        %v861 = vadd.f32 %v859, 0.0001
        %v862 = vadd.f32 %v860, 0.0001
        %865 = vrot.lane.b32.xlu0 %v784, 64
        %v866 = vpop.permute.xlu0 %865
        %867 = vrot.lane.b32.xlu0 %v789, 64
        %v868 = vpop.permute.xlu0 %867
        %v871 = vsel %vm794, %v866, 1.0
        %v872 = vsel %vm794, %v868, 1.0
        %873 = vxpose.xlu0.b32.start [1/16] %v861, 128
        %874 = vxpose.xlu0.b32.cont [2/16] %v862, 128
        %875 = vxpose.xlu0.b32.cont [3/16] 0.0, 128
        %876 = vxpose.xlu0.b32.cont [4/16] 0.0, 128
        %877 = vxpose.xlu0.b32.cont [5/16] 0.0, 128
        %878 = vxpose.xlu0.b32.cont [6/16] 0.0, 128
        %879 = vxpose.xlu0.b32.cont [7/16] 0.0, 128
        %880 = vxpose.xlu0.b32.cont [8/16] 0.0, 128
        %881 = vxpose.xlu0.b32.cont [9/16] 0.0, 128
        %882 = vxpose.xlu0.b32.cont [10/16] 0.0, 128
        %883 = vxpose.xlu0.b32.cont [11/16] 0.0, 128
        %884 = vxpose.xlu0.b32.cont [12/16] 0.0, 128
        %885 = vxpose.xlu0.b32.cont [13/16] 0.0, 128
        %886 = vxpose.xlu0.b32.cont [14/16] 0.0, 128
        %887 = vxpose.xlu0.b32.cont [15/16] 0.0, 128
        %888 = vxpose.xlu0.b32.end [16/16] 0.0, 128
        %v889 = vpop.trf.xlu0
        %v890 = vpop.trf.xlu0
        %v891 = vpop.trf.xlu0
        %v892 = vpop.trf.xlu0
        %v893 = vpop.trf.xlu0
        %v894 = vpop.trf.xlu0
        %v895 = vpop.trf.xlu0
        %v896 = vpop.trf.xlu0
        %v897 = vpop.trf.xlu0
        %v898 = vpop.trf.xlu0
        %v899 = vpop.trf.xlu0
        %v900 = vpop.trf.xlu0
        %v901 = vpop.trf.xlu0
        %v902 = vpop.trf.xlu0
        %v903 = vpop.trf.xlu0
        %v904 = vpop.trf.xlu0
        %vm905 = vcmask 130048
        %v907 = vsel %vm905, %v889, 0
        %v910 = vsel %vm905, %v890, 0
        %v913 = vsel %vm905, %v891, 0
        %v916 = vsel %vm905, %v892, 0
        %v919 = vsel %vm905, %v893, 0
        %v922 = vsel %vm905, %v894, 0
        %v925 = vsel %vm905, %v895, 0
        %v928 = vsel %vm905, %v896, 0
        %930 = vmatprep.subr.mxu0 0.0
        %931 = vmatpush1.msra.mxu0 %v871
        %932 = vmatprep.subr.mxu0 0.0
        %933 = vmatpush1.msra.mxu0 %v872
        %934 = vmatprep.subr.mxu0 0.0
        %935 = vmatpush1.msra.mxu0 0.0
        %936 = vmatprep.subr.mxu0 0.0
        %937 = vmatpush1.msra.mxu0 0.0
        %938 = vmatprep.subr.mxu0 0.0
        %939 = vmatpush1.msra.mxu0 0.0
        %940 = vmatprep.subr.mxu0 0.0
        %941 = vmatpush1.msra.mxu0 0.0
        %942 = vmatprep.subr.mxu0 0.0
        %943 = vmatpush1.msra.mxu0 0.0
        %944 = vmatprep.subr.mxu0 0.0
        %945 = vmatpush1.msra.mxu0 0.0
        %946 = vmatprep.subr.mxu0 0.0
        %947 = vmatpush1.msra.mxu0 0.0
        %948 = vmatprep.subr.mxu0 0.0
        %949 = vmatpush1.msra.mxu0 0.0
        %950 = vmatprep.subr.mxu0 0.0
        %951 = vmatpush1.msra.mxu0 0.0
        %952 = vmatprep.subr.mxu0 0.0
        %953 = vmatpush1.msra.mxu0 0.0
        %954 = vmatprep.subr.mxu0 0.0
        %955 = vmatpush1.msra.mxu0 0.0
        %956 = vmatprep.subr.mxu0 0.0
        %957 = vmatpush1.msra.mxu0 0.0
        %958 = vmatprep.subr.mxu0 0.0
        %959 = vmatpush1.msra.mxu0 0.0
        %960 = vmatprep.subr.mxu0 0.0
        %961 = vmatpush1.msra.mxu0 0.0
        %962 = vmatprep.subr.mxu0 0.0
        %963 = vmatpush1.msra.mxu0 0.0
        %964 = vmatprep.subr.mxu0 0.0
        %965 = vmatpush1.msra.mxu0 0.0
        %966 = vmatprep.subr.mxu0 0.0
        %967 = vmatpush1.msra.mxu0 0.0
        %968 = vmatprep.subr.mxu0 0.0
        %969 = vmatpush1.msra.mxu0 0.0
        %970 = vmatprep.subr.mxu0 0.0
        %971 = vmatpush1.msra.mxu0 0.0
        %972 = vmatprep.subr.mxu0 0.0
        %973 = vmatpush1.msra.mxu0 0.0
        %974 = vmatprep.subr.mxu0 0.0
        %975 = vmatpush1.msra.mxu0 0.0
        %976 = vmatprep.subr.mxu0 0.0
        %977 = vmatpush1.msra.mxu0 0.0
        %978 = vmatprep.subr.mxu0 0.0
        %979 = vmatpush1.msra.mxu0 0.0
        %980 = vmatprep.subr.mxu0 0.0
        %981 = vmatpush1.msra.mxu0 0.0
        %982 = vmatprep.subr.mxu0 0.0
        %983 = vmatpush1.msra.mxu0 0.0
        %984 = vmatprep.subr.mxu0 0.0
        %985 = vmatpush1.msra.mxu0 0.0
        %986 = vmatprep.subr.mxu0 0.0
        %987 = vmatpush1.msra.mxu0 0.0
        %988 = vmatprep.subr.mxu0 0.0
        %989 = vmatpush1.msra.mxu0 0.0
        %990 = vmatprep.subr.mxu0 0.0
        %991 = vmatpush1.msra.mxu0 0.0
        %992 = vmatprep.subr.mxu0 0.0
        %993 = vmatpush1.msra.mxu0 0.0
        %994 = vmatprep.mubr.f32.mxu0 0.0
        %995 = vmatmul.mubr.f32.gmra.mrb[0].mxu0 %v907
        %v996 = vpop.f32.mrb[0].mxu0
        %v997 = vadd.f32 0.0, %v996
        %v998 = vpop.f32.mrb[0].mxu0
        %999 = vmatprep.mubr.f32.mxu0 0.0
        %1000 = vmatmul.mubr.f32.gmra.mrb[0].mxu0 %v910
        %v1001 = vpop.f32.mrb[0].mxu0
        %v1002 = vadd.f32 0.0, %v1001
        %v1003 = vpop.f32.mrb[0].mxu0
        %1004 = vmatprep.mubr.f32.mxu0 0.0
        %1005 = vmatmul.mubr.f32.gmra.mrb[0].mxu0 %v913
        %v1006 = vpop.f32.mrb[0].mxu0
        %v1007 = vadd.f32 0.0, %v1006
        %v1008 = vpop.f32.mrb[0].mxu0
        %1009 = vmatprep.mubr.f32.mxu0 0.0
        %1010 = vmatmul.mubr.f32.gmra.mrb[0].mxu0 %v916
        %v1011 = vpop.f32.mrb[0].mxu0
        %v1012 = vadd.f32 0.0, %v1011
        %v1013 = vpop.f32.mrb[0].mxu0
        %1014 = vmatprep.mubr.f32.mxu0 0.0
        %1015 = vmatmul.mubr.f32.gmra.mrb[0].mxu0 %v919
        %v1016 = vpop.f32.mrb[0].mxu0
        %v1017 = vadd.f32 0.0, %v1016
        %v1018 = vpop.f32.mrb[0].mxu0
        %1019 = vmatprep.mubr.f32.mxu0 0.0
        %1020 = vmatmul.mubr.f32.gmra.mrb[0].mxu0 %v922
        %v1021 = vpop.f32.mrb[0].mxu0
        %v1022 = vadd.f32 0.0, %v1021
        %v1023 = vpop.f32.mrb[0].mxu0
        %1024 = vmatprep.mubr.f32.mxu0 0.0
        %1025 = vmatmul.mubr.f32.gmra.mrb[0].mxu0 %v925
        %v1026 = vpop.f32.mrb[0].mxu0
        %v1027 = vadd.f32 0.0, %v1026
        %v1028 = vpop.f32.mrb[0].mxu0
        %1029 = vmatprep.mubr.f32.mxu0 0.0
        %1030 = vmatmul.mubr.f32.gmra.mrb[0].mxu0 %v928
        %v1031 = vpop.f32.mrb[0].mxu0
        %v1032 = vadd.f32 0.0, %v1031
        %v1033 = vpop.f32.mrb[0].mxu0
        %1034 = vdwg.mxu0
        %v1036 = vsel %vm819, %v848, 0
        %v1039 = vsel %vm819, %v849, 0
        %1041 = vmatprep.subr.mxu0 0.0
        %1042 = vmatpush1.msra.mxu0 %v997
        %1043 = vmatprep.subr.mxu0 0.0
        %1044 = vmatpush1.msra.mxu0 %v1002
        %1045 = vmatprep.subr.mxu0 0.0
        %1046 = vmatpush1.msra.mxu0 %v1007
        %1047 = vmatprep.subr.mxu0 0.0
        %1048 = vmatpush1.msra.mxu0 %v1012
        %1049 = vmatprep.subr.mxu0 0.0
        %1050 = vmatpush1.msra.mxu0 %v1017
        %1051 = vmatprep.subr.mxu0 0.0
        %1052 = vmatpush1.msra.mxu0 %v1022
        %1053 = vmatprep.subr.mxu0 0.0
        %1054 = vmatpush1.msra.mxu0 %v1027
        %1055 = vmatprep.subr.mxu0 0.0
        %1056 = vmatpush1.msra.mxu0 %v1032
        %1057 = vmatprep.subr.mxu0 0.0
        %1058 = vmatpush1.msra.mxu0 0.0
        %1059 = vmatprep.subr.mxu0 0.0
        %1060 = vmatpush1.msra.mxu0 0.0
        %1061 = vmatprep.subr.mxu0 0.0
        %1062 = vmatpush1.msra.mxu0 0.0
        %1063 = vmatprep.subr.mxu0 0.0
        %1064 = vmatpush1.msra.mxu0 0.0
        %1065 = vmatprep.subr.mxu0 0.0
        %1066 = vmatpush1.msra.mxu0 0.0
        %1067 = vmatprep.subr.mxu0 0.0
        %1068 = vmatpush1.msra.mxu0 0.0
        %1069 = vmatprep.subr.mxu0 0.0
        %1070 = vmatpush1.msra.mxu0 0.0
        %1071 = vmatprep.subr.mxu0 0.0
        %1072 = vmatpush1.msra.mxu0 0.0
        %1073 = vmatprep.subr.mxu0 0.0
        %1074 = vmatpush1.msra.mxu0 0.0
        %1075 = vmatprep.subr.mxu0 0.0
        %1076 = vmatpush1.msra.mxu0 0.0
        %1077 = vmatprep.subr.mxu0 0.0
        %1078 = vmatpush1.msra.mxu0 0.0
        %1079 = vmatprep.subr.mxu0 0.0
        %1080 = vmatpush1.msra.mxu0 0.0
        %1081 = vmatprep.subr.mxu0 0.0
        %1082 = vmatpush1.msra.mxu0 0.0
        %1083 = vmatprep.subr.mxu0 0.0
        %1084 = vmatpush1.msra.mxu0 0.0
        %1085 = vmatprep.subr.mxu0 0.0
        %1086 = vmatpush1.msra.mxu0 0.0
        %1087 = vmatprep.subr.mxu0 0.0
        %1088 = vmatpush1.msra.mxu0 0.0
        %1089 = vmatprep.subr.mxu0 0.0
        %1090 = vmatpush1.msra.mxu0 0.0
        %1091 = vmatprep.subr.mxu0 0.0
        %1092 = vmatpush1.msra.mxu0 0.0
        %1093 = vmatprep.subr.mxu0 0.0
        %1094 = vmatpush1.msra.mxu0 0.0
        %1095 = vmatprep.subr.mxu0 0.0
        %1096 = vmatpush1.msra.mxu0 0.0
        %1097 = vmatprep.subr.mxu0 0.0
        %1098 = vmatpush1.msra.mxu0 0.0
        %1099 = vmatprep.subr.mxu0 0.0
        %1100 = vmatpush1.msra.mxu0 0.0
        %1101 = vmatprep.subr.mxu0 0.0
        %1102 = vmatpush1.msra.mxu0 0.0
        %1103 = vmatprep.subr.mxu0 0.0
        %1104 = vmatpush1.msra.mxu0 0.0
        %1105 = vmatprep.mubr.f32.mxu0 0.0
        %1106 = vmatmul.mubr.f32.gmra.mrb[0].mxu0 %v1036
        %v1107 = vpop.f32.mrb[0].mxu0
        %v1108 = vadd.f32 0.0, %v1107
        %v1109 = vpop.f32.mrb[0].mxu0
        %1110 = vmatprep.mubr.f32.mxu0 0.0
        %1111 = vmatmul.mubr.f32.gmra.mrb[0].mxu0 %v1039
        %v1112 = vpop.f32.mrb[0].mxu0
        %v1113 = vadd.f32 0.0, %v1112
        %v1114 = vpop.f32.mrb[0].mxu0
        %1115 = vdwg.mxu0
        %v1116 = vmax.f32 %v1108, 0.01
        %v1117 = vmax.f32 %v1113, 0.01
        %v1118 = vrcp.pop %v1116
        %v1119 = vrcp.pop %v1117
        %1121 = vset.pattern.permute.xlu0 8
        %1122 = vperm.xlu0 %1121, %v1118
        %v1123 = vpop.permute.xlu0 %1122
        %1126 = vset.pattern.permute.xlu0 8
        %1127 = vperm.xlu0 %1126, %v1119
        %v1128 = vpop.permute.xlu0 %1127
        %v1130 = vmul.f32 %v1108, %v1123
        %v1131 = vmul.f32 %v1113, %v1128
        %1132 = vrot.lane.b32.xlu0 %v792, 120
        %v1133 = vpop.permute.xlu0 %1132
        %1134 = vrot.lane.b32.xlu0 %v793, 120
        %v1135 = vpop.permute.xlu0 %1134
        %v1138 = vsel %vm794, %v1133, 0.0
        %1139 = vadd.xlane.f32.xlu0 %v1138
        %v1140 = vpop.xlane.xlu0 %1139
        %v1141 = vsel %vm794, %v1135, 0.0
        %1142 = vadd.xlane.f32.xlu0 %v1141
        %v1143 = vpop.xlane.xlu0 %1142
        %v1144 = vmul.f32 %v1140, 0.17677669
        %v1145 = vmul.f32 %v1143, 0.17677669
        %1146 = vrot.lane.b32.xlu0 %v792, 88
        %v1147 = vpop.permute.xlu0 %1146
        %1148 = vrot.lane.b32.xlu0 %v793, 88
        %v1149 = vpop.permute.xlu0 %1148
        %v1152 = vsel %vm794, %v1147, 0.0
        %1153 = vadd.xlane.f32.xlu0 %v1152
        %v1154 = vpop.xlane.xlu0 %1153
        %v1155 = vsel %vm794, %v1149, 0.0
        %1156 = vadd.xlane.f32.xlu0 %v1155
        %v1157 = vpop.xlane.xlu0 %1156
        %v1158 = vmul.f32 %v1154, 0.17677669
        %v1159 = vmul.f32 %v1157, 0.17677669
        %vm1160 = vcmask 1048064
        %v1161 = vsel %vm1160, %v630, -inf
        %1162 = vmax.xlane.f32.xlu0 %v1161
        %v1163 = vpop.xlane.xlu0 %1162
        %v1164 = vsel %vm1160, %v636, -inf
        %1165 = vmax.xlane.f32.xlu0 %v1164
        %v1166 = vpop.xlane.xlu0 %1165
        %v1167 = vsel %vm1160, %v707, -inf
        %v1168 = vsel %vm1160, %v713, -inf
        %v1169 = vmax.f32 %v1167, %v1168
        %1170 = vmax.xlane.f32.xlu0 %v1169
        %v1171 = vpop.xlane.xlu0 %1170
        %v1172 = vrot.slane %v1171, 4
        %v1173 = vmax.f32 %v1171, %v1172
        %v1174 = vrot.slane %v1173, 2
        %v1175 = vmax.f32 %v1173, %v1174
        %v1176 = vrot.slane %v1175, 1
        %v1177 = vmax.f32 %v1175, %v1176
        %s1178 = vtos %v1177
        %v1179 = vsub.f32 %v630, %v1144
        %v1180 = vsub.f32 %v636, %v1145
        %v1181 = vsub.f32 %v1179, %v1163
        %v1182 = vsub.f32 %v1180, %v1166
        %v1183 = vmul.f32 %v1181, 1.442695
        %v1184 = vpow.pop %v1183
        %v1185 = vmul.f32 %v1182, 1.442695
        %v1186 = vpow.pop %v1185
        %v1187 = vmul.f32 %v1184, 0.125
        %v1188 = vmul.f32 %v1186, 0.125
        %v1189 = vadd.f32 %v1187, 0.0001
        %v1190 = vadd.f32 %v1188, 0.0001
        %v1191 = vsub.f32 %v707, %v1158
        %v1192 = vsub.f32 %v713, %v1159
        %v1193 = vstv %s1178
        %v1194 = vsub.f32 %v1191, %v1193
        %v1195 = vsub.f32 %v1192, %v1193
        %v1196 = vmul.f32 %v1194, 1.442695
        %v1197 = vpow.pop %v1196
        %v1198 = vmul.f32 %v1195, 1.442695
        %v1199 = vpow.pop %v1198
        %v1200 = vmul.f32 %v1197, 0.125
        %v1201 = vmul.f32 %v1199, 0.125
        %v1202 = vadd.f32 %v1200, 0.0001
        %v1203 = vadd.f32 %v1201, 0.0001
        %1204 = vrot.lane.b32.xlu0 %v784, 56
        %v1205 = vpop.permute.xlu0 %1204
        %1206 = vrot.lane.b32.xlu0 %v789, 56
        %v1207 = vpop.permute.xlu0 %1206
        %v1210 = vsel %vm794, %v1205, 1.0
        %v1211 = vsel %vm794, %v1207, 1.0
        %1214 = vrot.lane.b32.xlu0 %v1202, 64
        %v1215 = vpop.permute.xlu0 %1214
        %1216 = vrot.lane.b32.xlu0 %v1203, 64
        %v1217 = vpop.permute.xlu0 %1216
        %1220 = vxpose.xlu0.b32.start [1/16] %v1215, 128
        %1221 = vxpose.xlu0.b32.cont [2/16] %v1217, 128
        %1222 = vxpose.xlu0.b32.cont [3/16] 0.0, 128
        %1223 = vxpose.xlu0.b32.cont [4/16] 0.0, 128
        %1224 = vxpose.xlu0.b32.cont [5/16] 0.0, 128
        %1225 = vxpose.xlu0.b32.cont [6/16] 0.0, 128
        %1226 = vxpose.xlu0.b32.cont [7/16] 0.0, 128
        %1227 = vxpose.xlu0.b32.cont [8/16] 0.0, 128
        %1228 = vxpose.xlu0.b32.cont [9/16] 0.0, 128
        %1229 = vxpose.xlu0.b32.cont [10/16] 0.0, 128
        %1230 = vxpose.xlu0.b32.cont [11/16] 0.0, 128
        %1231 = vxpose.xlu0.b32.cont [12/16] 0.0, 128
        %1232 = vxpose.xlu0.b32.cont [13/16] 0.0, 128
        %1233 = vxpose.xlu0.b32.cont [14/16] 0.0, 128
        %1234 = vxpose.xlu0.b32.cont [15/16] 0.0, 128
        %1235 = vxpose.xlu0.b32.end [16/16] 0.0, 128
        %v1236 = vpop.trf.xlu0
        %v1237 = vpop.trf.xlu0
        %v1238 = vpop.trf.xlu0
        %v1239 = vpop.trf.xlu0
        %v1240 = vpop.trf.xlu0
        %v1241 = vpop.trf.xlu0
        %v1242 = vpop.trf.xlu0
        %v1243 = vpop.trf.xlu0
        %v1244 = vpop.trf.xlu0
        %v1245 = vpop.trf.xlu0
        %v1246 = vpop.trf.xlu0
        %v1247 = vpop.trf.xlu0
        %v1248 = vpop.trf.xlu0
        %v1249 = vpop.trf.xlu0
        %v1250 = vpop.trf.xlu0
        %v1251 = vpop.trf.xlu0
        %v1253 = vsel %vm905, %v1236, 0
        %v1256 = vsel %vm905, %v1237, 0
        %v1259 = vsel %vm905, %v1238, 0
        %v1262 = vsel %vm905, %v1239, 0
        %v1265 = vsel %vm905, %v1240, 0
        %v1268 = vsel %vm905, %v1241, 0
        %v1271 = vsel %vm905, %v1242, 0
        %v1274 = vsel %vm905, %v1243, 0
        %1276 = vmatprep.subr.mxu0 0.0
        %1277 = vmatpush1.msra.mxu0 %v1210
        %1278 = vmatprep.subr.mxu0 0.0
        %1279 = vmatpush1.msra.mxu0 %v1211
        %1280 = vmatprep.subr.mxu0 0.0
        %1281 = vmatpush1.msra.mxu0 0.0
        %1282 = vmatprep.subr.mxu0 0.0
        %1283 = vmatpush1.msra.mxu0 0.0
        %1284 = vmatprep.subr.mxu0 0.0
        %1285 = vmatpush1.msra.mxu0 0.0
        %1286 = vmatprep.subr.mxu0 0.0
        %1287 = vmatpush1.msra.mxu0 0.0
        %1288 = vmatprep.subr.mxu0 0.0
        %1289 = vmatpush1.msra.mxu0 0.0
        %1290 = vmatprep.subr.mxu0 0.0
        %1291 = vmatpush1.msra.mxu0 0.0
        %1292 = vmatprep.subr.mxu0 0.0
        %1293 = vmatpush1.msra.mxu0 0.0
        %1294 = vmatprep.subr.mxu0 0.0
        %1295 = vmatpush1.msra.mxu0 0.0
        %1296 = vmatprep.subr.mxu0 0.0
        %1297 = vmatpush1.msra.mxu0 0.0
        %1298 = vmatprep.subr.mxu0 0.0
        %1299 = vmatpush1.msra.mxu0 0.0
        %1300 = vmatprep.subr.mxu0 0.0
        %1301 = vmatpush1.msra.mxu0 0.0
        %1302 = vmatprep.subr.mxu0 0.0
        %1303 = vmatpush1.msra.mxu0 0.0
        %1304 = vmatprep.subr.mxu0 0.0
        %1305 = vmatpush1.msra.mxu0 0.0
        %1306 = vmatprep.subr.mxu0 0.0
        %1307 = vmatpush1.msra.mxu0 0.0
        %1308 = vmatprep.subr.mxu0 0.0
        %1309 = vmatpush1.msra.mxu0 0.0
        %1310 = vmatprep.subr.mxu0 0.0
        %1311 = vmatpush1.msra.mxu0 0.0
        %1312 = vmatprep.subr.mxu0 0.0
        %1313 = vmatpush1.msra.mxu0 0.0
        %1314 = vmatprep.subr.mxu0 0.0
        %1315 = vmatpush1.msra.mxu0 0.0
        %1316 = vmatprep.subr.mxu0 0.0
        %1317 = vmatpush1.msra.mxu0 0.0
        %1318 = vmatprep.subr.mxu0 0.0
        %1319 = vmatpush1.msra.mxu0 0.0
        %1320 = vmatprep.subr.mxu0 0.0
        %1321 = vmatpush1.msra.mxu0 0.0
        %1322 = vmatprep.subr.mxu0 0.0
        %1323 = vmatpush1.msra.mxu0 0.0
        %1324 = vmatprep.subr.mxu0 0.0
        %1325 = vmatpush1.msra.mxu0 0.0
        %1326 = vmatprep.subr.mxu0 0.0
        %1327 = vmatpush1.msra.mxu0 0.0
        %1328 = vmatprep.subr.mxu0 0.0
        %1329 = vmatpush1.msra.mxu0 0.0
        %1330 = vmatprep.subr.mxu0 0.0
        %1331 = vmatpush1.msra.mxu0 0.0
        %1332 = vmatprep.subr.mxu0 0.0
        %1333 = vmatpush1.msra.mxu0 0.0
        %1334 = vmatprep.subr.mxu0 0.0
        %1335 = vmatpush1.msra.mxu0 0.0
        %1336 = vmatprep.subr.mxu0 0.0
        %1337 = vmatpush1.msra.mxu0 0.0
        %1338 = vmatprep.subr.mxu0 0.0
        %1339 = vmatpush1.msra.mxu0 0.0
        %1340 = vmatprep.mubr.f32.mxu0 0.0
        %1341 = vmatmul.mubr.f32.gmra.mrb[0].mxu0 %v1253
        %v1342 = vpop.f32.mrb[0].mxu0
        %v1343 = vadd.f32 0.0, %v1342
        %v1344 = vpop.f32.mrb[0].mxu0
        %1345 = vmatprep.mubr.f32.mxu0 0.0
        %1346 = vmatmul.mubr.f32.gmra.mrb[0].mxu0 %v1256
        %v1347 = vpop.f32.mrb[0].mxu0
        %v1348 = vadd.f32 0.0, %v1347
        %v1349 = vpop.f32.mrb[0].mxu0
        %1350 = vmatprep.mubr.f32.mxu0 0.0
        %1351 = vmatmul.mubr.f32.gmra.mrb[0].mxu0 %v1259
        %v1352 = vpop.f32.mrb[0].mxu0
        %v1353 = vadd.f32 0.0, %v1352
        %v1354 = vpop.f32.mrb[0].mxu0
        %1355 = vmatprep.mubr.f32.mxu0 0.0
        %1356 = vmatmul.mubr.f32.gmra.mrb[0].mxu0 %v1262
        %v1357 = vpop.f32.mrb[0].mxu0
        %v1358 = vadd.f32 0.0, %v1357
        %v1359 = vpop.f32.mrb[0].mxu0
        %1360 = vmatprep.mubr.f32.mxu0 0.0
        %1361 = vmatmul.mubr.f32.gmra.mrb[0].mxu0 %v1265
        %v1362 = vpop.f32.mrb[0].mxu0
        %v1363 = vadd.f32 0.0, %v1362
        %v1364 = vpop.f32.mrb[0].mxu0
        %1365 = vmatprep.mubr.f32.mxu0 0.0
        %1366 = vmatmul.mubr.f32.gmra.mrb[0].mxu0 %v1268
        %v1367 = vpop.f32.mrb[0].mxu0
        %v1368 = vadd.f32 0.0, %v1367
        %v1369 = vpop.f32.mrb[0].mxu0
        %1370 = vmatprep.mubr.f32.mxu0 0.0
        %1371 = vmatmul.mubr.f32.gmra.mrb[0].mxu0 %v1271
        %v1372 = vpop.f32.mrb[0].mxu0
        %v1373 = vadd.f32 0.0, %v1372
        %v1374 = vpop.f32.mrb[0].mxu0
        %1375 = vmatprep.mubr.f32.mxu0 0.0
        %1376 = vmatmul.mubr.f32.gmra.mrb[0].mxu0 %v1274
        %v1377 = vpop.f32.mrb[0].mxu0
        %v1378 = vadd.f32 0.0, %v1377
        %v1379 = vpop.f32.mrb[0].mxu0
        %1380 = vdwg.mxu0
        %1383 = vrot.lane.b32.xlu0 %v1189, 64
        %v1384 = vpop.permute.xlu0 %1383
        %1385 = vrot.lane.b32.xlu0 %v1190, 64
        %v1386 = vpop.permute.xlu0 %1385
        %v1387 = vsel %vm819, %v1384, 0
        %v1389 = vsel %vm819, %v1386, 0
        %1391 = vmatprep.subr.mxu0 0.0
        %1392 = vmatpush1.msra.mxu0 %v1343
        %1393 = vmatprep.subr.mxu0 0.0
        %1394 = vmatpush1.msra.mxu0 %v1348
        %1395 = vmatprep.subr.mxu0 0.0
        %1396 = vmatpush1.msra.mxu0 %v1353
        %1397 = vmatprep.subr.mxu0 0.0
        %1398 = vmatpush1.msra.mxu0 %v1358
        %1399 = vmatprep.subr.mxu0 0.0
        %1400 = vmatpush1.msra.mxu0 %v1363
        %1401 = vmatprep.subr.mxu0 0.0
        %1402 = vmatpush1.msra.mxu0 %v1368
        %1403 = vmatprep.subr.mxu0 0.0
        %1404 = vmatpush1.msra.mxu0 %v1373
        %1405 = vmatprep.subr.mxu0 0.0
        %1406 = vmatpush1.msra.mxu0 %v1378
        %1407 = vmatprep.subr.mxu0 0.0
        %1408 = vmatpush1.msra.mxu0 0.0
        %1409 = vmatprep.subr.mxu0 0.0
        %1410 = vmatpush1.msra.mxu0 0.0
        %1411 = vmatprep.subr.mxu0 0.0
        %1412 = vmatpush1.msra.mxu0 0.0
        %1413 = vmatprep.subr.mxu0 0.0
        %1414 = vmatpush1.msra.mxu0 0.0
        %1415 = vmatprep.subr.mxu0 0.0
        %1416 = vmatpush1.msra.mxu0 0.0
        %1417 = vmatprep.subr.mxu0 0.0
        %1418 = vmatpush1.msra.mxu0 0.0
        %1419 = vmatprep.subr.mxu0 0.0
        %1420 = vmatpush1.msra.mxu0 0.0
        %1421 = vmatprep.subr.mxu0 0.0
        %1422 = vmatpush1.msra.mxu0 0.0
        %1423 = vmatprep.subr.mxu0 0.0
        %1424 = vmatpush1.msra.mxu0 0.0
        %1425 = vmatprep.subr.mxu0 0.0
        %1426 = vmatpush1.msra.mxu0 0.0
        %1427 = vmatprep.subr.mxu0 0.0
        %1428 = vmatpush1.msra.mxu0 0.0
        %1429 = vmatprep.subr.mxu0 0.0
        %1430 = vmatpush1.msra.mxu0 0.0
        %1431 = vmatprep.subr.mxu0 0.0
        %1432 = vmatpush1.msra.mxu0 0.0
        %1433 = vmatprep.subr.mxu0 0.0
        %1434 = vmatpush1.msra.mxu0 0.0
        %1435 = vmatprep.subr.mxu0 0.0
        %1436 = vmatpush1.msra.mxu0 0.0
        %1437 = vmatprep.subr.mxu0 0.0
        %1438 = vmatpush1.msra.mxu0 0.0
        %1439 = vmatprep.subr.mxu0 0.0
        %1440 = vmatpush1.msra.mxu0 0.0
        %1441 = vmatprep.subr.mxu0 0.0
        %1442 = vmatpush1.msra.mxu0 0.0
        %1443 = vmatprep.subr.mxu0 0.0
        %1444 = vmatpush1.msra.mxu0 0.0
        %1445 = vmatprep.subr.mxu0 0.0
        %1446 = vmatpush1.msra.mxu0 0.0
        %1447 = vmatprep.subr.mxu0 0.0
        %1448 = vmatpush1.msra.mxu0 0.0
        %1449 = vmatprep.subr.mxu0 0.0
        %1450 = vmatpush1.msra.mxu0 0.0
        %1451 = vmatprep.subr.mxu0 0.0
        %1452 = vmatpush1.msra.mxu0 0.0
        %1453 = vmatprep.subr.mxu0 0.0
        %1454 = vmatpush1.msra.mxu0 0.0
        %1455 = vmatprep.mubr.f32.mxu0 0.0
        %1456 = vmatmul.mubr.f32.gmra.mrb[0].mxu0 %v1387
        %v1457 = vpop.f32.mrb[0].mxu0
        %v1458 = vadd.f32 0.0, %v1457
        %v1459 = vpop.f32.mrb[0].mxu0
        %1460 = vmatprep.mubr.f32.mxu0 0.0
        %1461 = vmatmul.mubr.f32.gmra.mrb[0].mxu0 %v1389
        %v1462 = vpop.f32.mrb[0].mxu0
        %v1463 = vadd.f32 0.0, %v1462
        %v1464 = vpop.f32.mrb[0].mxu0
        %1465 = vdwg.mxu0
        %v1466 = vmax.f32 %v1458, 0.01
        %v1467 = vmax.f32 %v1463, 0.01
        %v1468 = vrcp.pop %v1466
        %v1469 = vrcp.pop %v1467
        %1471 = vset.pattern.permute.xlu0 8
        %1472 = vperm.xlu0 %1471, %v1468
        %v1473 = vpop.permute.xlu0 %1472
        %1476 = vset.pattern.permute.xlu0 8
        %1477 = vperm.xlu0 %1476, %v1469
        %v1478 = vpop.permute.xlu0 %1477
        %v1480 = vmul.f32 %v1458, %v1473
        %v1481 = vmul.f32 %v1463, %v1478
        %1482 = vrot.lane.b32.xlu0 %v792, 112
        %v1483 = vpop.permute.xlu0 %1482
        %1484 = vrot.lane.b32.xlu0 %v793, 112
        %v1485 = vpop.permute.xlu0 %1484
        %v1488 = vsel %vm794, %v1483, 0.0
        %1489 = vadd.xlane.f32.xlu0 %v1488
        %v1490 = vpop.xlane.xlu0 %1489
        %v1491 = vsel %vm794, %v1485, 0.0
        %1492 = vadd.xlane.f32.xlu0 %v1491
        %v1493 = vpop.xlane.xlu0 %1492
        %v1494 = vmul.f32 %v1490, 0.17677669
        %v1495 = vmul.f32 %v1493, 0.17677669
        %1496 = vrot.lane.b32.xlu0 %v792, 80
        %v1497 = vpop.permute.xlu0 %1496
        %1498 = vrot.lane.b32.xlu0 %v793, 80
        %v1499 = vpop.permute.xlu0 %1498
        %v1502 = vsel %vm794, %v1497, 0.0
        %1503 = vadd.xlane.f32.xlu0 %v1502
        %v1504 = vpop.xlane.xlu0 %1503
        %v1505 = vsel %vm794, %v1499, 0.0
        %1506 = vadd.xlane.f32.xlu0 %v1505
        %v1507 = vpop.xlane.xlu0 %1506
        %v1508 = vmul.f32 %v1504, 0.17677669
        %v1509 = vmul.f32 %v1507, 0.17677669
        %v1510 = vsel %vm819, %v632, -inf
        %1511 = vmax.xlane.f32.xlu0 %v1510
        %v1512 = vpop.xlane.xlu0 %1511
        %v1513 = vsel %vm819, %v638, -inf
        %1514 = vmax.xlane.f32.xlu0 %v1513
        %v1515 = vpop.xlane.xlu0 %1514
        %v1516 = vsel %vm819, %v709, -inf
        %v1517 = vsel %vm819, %v715, -inf
        %v1518 = vmax.f32 %v1516, %v1517
        %1519 = vmax.xlane.f32.xlu0 %v1518
        %v1520 = vpop.xlane.xlu0 %1519
        %v1521 = vrot.slane %v1520, 4
        %v1522 = vmax.f32 %v1520, %v1521
        %v1523 = vrot.slane %v1522, 2
        %v1524 = vmax.f32 %v1522, %v1523
        %v1525 = vrot.slane %v1524, 1
        %v1526 = vmax.f32 %v1524, %v1525
        %s1527 = vtos %v1526
        %v1528 = vsub.f32 %v632, %v1494
        %v1529 = vsub.f32 %v638, %v1495
        %v1530 = vsub.f32 %v1528, %v1512
        %v1531 = vsub.f32 %v1529, %v1515
        %v1532 = vmul.f32 %v1530, 1.442695
        %v1533 = vpow.pop %v1532
        %v1534 = vmul.f32 %v1531, 1.442695
        %v1535 = vpow.pop %v1534
        %v1536 = vmul.f32 %v1533, 0.125
        %v1537 = vmul.f32 %v1535, 0.125
        %v1538 = vadd.f32 %v1536, 0.0001
        %v1539 = vadd.f32 %v1537, 0.0001
        %v1540 = vsub.f32 %v709, %v1508
        %v1541 = vsub.f32 %v715, %v1509
        %v1542 = vstv %s1527
        %v1543 = vsub.f32 %v1540, %v1542
        %v1544 = vsub.f32 %v1541, %v1542
        %v1545 = vmul.f32 %v1543, 1.442695
        %v1546 = vpow.pop %v1545
        %v1547 = vmul.f32 %v1544, 1.442695
        %v1548 = vpow.pop %v1547
        %v1549 = vmul.f32 %v1546, 0.125
        %v1550 = vmul.f32 %v1548, 0.125
        %v1551 = vadd.f32 %v1549, 0.0001
        %v1552 = vadd.f32 %v1550, 0.0001
        %1553 = vrot.lane.b32.xlu0 %v784, 48
        %v1554 = vpop.permute.xlu0 %1553
        %1555 = vrot.lane.b32.xlu0 %v789, 48
        %v1556 = vpop.permute.xlu0 %1555
        %v1559 = vsel %vm794, %v1554, 1.0
        %v1560 = vsel %vm794, %v1556, 1.0
        %1561 = vxpose.xlu0.b32.start [1/16] %v1551, 128
        %1562 = vxpose.xlu0.b32.cont [2/16] %v1552, 128
        %1563 = vxpose.xlu0.b32.cont [3/16] 0.0, 128
        %1564 = vxpose.xlu0.b32.cont [4/16] 0.0, 128
        %1565 = vxpose.xlu0.b32.cont [5/16] 0.0, 128
        %1566 = vxpose.xlu0.b32.cont [6/16] 0.0, 128
        %1567 = vxpose.xlu0.b32.cont [7/16] 0.0, 128
        %1568 = vxpose.xlu0.b32.cont [8/16] 0.0, 128
        %1569 = vxpose.xlu0.b32.cont [9/16] 0.0, 128
        %1570 = vxpose.xlu0.b32.cont [10/16] 0.0, 128
        %1571 = vxpose.xlu0.b32.cont [11/16] 0.0, 128
        %1572 = vxpose.xlu0.b32.cont [12/16] 0.0, 128
        %1573 = vxpose.xlu0.b32.cont [13/16] 0.0, 128
        %1574 = vxpose.xlu0.b32.cont [14/16] 0.0, 128
        %1575 = vxpose.xlu0.b32.cont [15/16] 0.0, 128
        %1576 = vxpose.xlu0.b32.end [16/16] 0.0, 128
        %v1577 = vpop.trf.xlu0
        %v1578 = vpop.trf.xlu0
        %v1579 = vpop.trf.xlu0
        %v1580 = vpop.trf.xlu0
        %v1581 = vpop.trf.xlu0
        %v1582 = vpop.trf.xlu0
        %v1583 = vpop.trf.xlu0
        %v1584 = vpop.trf.xlu0
        %v1585 = vpop.trf.xlu0
        %v1586 = vpop.trf.xlu0
        %v1587 = vpop.trf.xlu0
        %v1588 = vpop.trf.xlu0
        %v1589 = vpop.trf.xlu0
        %v1590 = vpop.trf.xlu0
        %v1591 = vpop.trf.xlu0
        %v1592 = vpop.trf.xlu0
        %v1594 = vsel %vm905, %v1577, 0
        %v1597 = vsel %vm905, %v1578, 0
        %v1600 = vsel %vm905, %v1579, 0
        %v1603 = vsel %vm905, %v1580, 0
        %v1606 = vsel %vm905, %v1581, 0
        %v1609 = vsel %vm905, %v1582, 0
        %v1612 = vsel %vm905, %v1583, 0
        %v1615 = vsel %vm905, %v1584, 0
        %1617 = vmatprep.subr.mxu0 0.0
        %1618 = vmatpush1.msra.mxu0 %v1559
        %1619 = vmatprep.subr.mxu0 0.0
        %1620 = vmatpush1.msra.mxu0 %v1560
        %1621 = vmatprep.subr.mxu0 0.0
        %1622 = vmatpush1.msra.mxu0 0.0
        %1623 = vmatprep.subr.mxu0 0.0
        %1624 = vmatpush1.msra.mxu0 0.0
        %1625 = vmatprep.subr.mxu0 0.0
        %1626 = vmatpush1.msra.mxu0 0.0
        %1627 = vmatprep.subr.mxu0 0.0
        %1628 = vmatpush1.msra.mxu0 0.0
        %1629 = vmatprep.subr.mxu0 0.0
        %1630 = vmatpush1.msra.mxu0 0.0
        %1631 = vmatprep.subr.mxu0 0.0
        %1632 = vmatpush1.msra.mxu0 0.0
        %1633 = vmatprep.subr.mxu0 0.0
        %1634 = vmatpush1.msra.mxu0 0.0
        %1635 = vmatprep.subr.mxu0 0.0
        %1636 = vmatpush1.msra.mxu0 0.0
        %1637 = vmatprep.subr.mxu0 0.0
        %1638 = vmatpush1.msra.mxu0 0.0
        %1639 = vmatprep.subr.mxu0 0.0
        %1640 = vmatpush1.msra.mxu0 0.0
        %1641 = vmatprep.subr.mxu0 0.0
        %1642 = vmatpush1.msra.mxu0 0.0
        %1643 = vmatprep.subr.mxu0 0.0
        %1644 = vmatpush1.msra.mxu0 0.0
        %1645 = vmatprep.subr.mxu0 0.0
        %1646 = vmatpush1.msra.mxu0 0.0
        %1647 = vmatprep.subr.mxu0 0.0
        %1648 = vmatpush1.msra.mxu0 0.0
        %1649 = vmatprep.subr.mxu0 0.0
        %1650 = vmatpush1.msra.mxu0 0.0
        %1651 = vmatprep.subr.mxu0 0.0
        %1652 = vmatpush1.msra.mxu0 0.0
        %1653 = vmatprep.subr.mxu0 0.0
        %1654 = vmatpush1.msra.mxu0 0.0
        %1655 = vmatprep.subr.mxu0 0.0
        %1656 = vmatpush1.msra.mxu0 0.0
        %1657 = vmatprep.subr.mxu0 0.0
        %1658 = vmatpush1.msra.mxu0 0.0
        %1659 = vmatprep.subr.mxu0 0.0
        %1660 = vmatpush1.msra.mxu0 0.0
        %1661 = vmatprep.subr.mxu0 0.0
        %1662 = vmatpush1.msra.mxu0 0.0
        %1663 = vmatprep.subr.mxu0 0.0
        %1664 = vmatpush1.msra.mxu0 0.0
        %1665 = vmatprep.subr.mxu0 0.0
        %1666 = vmatpush1.msra.mxu0 0.0
        %1667 = vmatprep.subr.mxu0 0.0
        %1668 = vmatpush1.msra.mxu0 0.0
        %1669 = vmatprep.subr.mxu0 0.0
        %1670 = vmatpush1.msra.mxu0 0.0
        %1671 = vmatprep.subr.mxu0 0.0
        %1672 = vmatpush1.msra.mxu0 0.0
        %1673 = vmatprep.subr.mxu0 0.0
        %1674 = vmatpush1.msra.mxu0 0.0
        %1675 = vmatprep.subr.mxu0 0.0
        %1676 = vmatpush1.msra.mxu0 0.0
        %1677 = vmatprep.subr.mxu0 0.0
        %1678 = vmatpush1.msra.mxu0 0.0
        %1679 = vmatprep.subr.mxu0 0.0
        %1680 = vmatpush1.msra.mxu0 0.0
        %1681 = vmatprep.mubr.f32.mxu0 0.0
        %1682 = vmatmul.mubr.f32.gmra.mrb[0].mxu0 %v1594
        %v1683 = vpop.f32.mrb[0].mxu0
        %v1684 = vadd.f32 0.0, %v1683
        %v1685 = vpop.f32.mrb[0].mxu0
        %1686 = vmatprep.mubr.f32.mxu0 0.0
        %1687 = vmatmul.mubr.f32.gmra.mrb[0].mxu0 %v1597
        %v1688 = vpop.f32.mrb[0].mxu0
        %v1689 = vadd.f32 0.0, %v1688
        %v1690 = vpop.f32.mrb[0].mxu0
        %1691 = vmatprep.mubr.f32.mxu0 0.0
        %1692 = vmatmul.mubr.f32.gmra.mrb[0].mxu0 %v1600
        %v1693 = vpop.f32.mrb[0].mxu0
        %v1694 = vadd.f32 0.0, %v1693
        %v1695 = vpop.f32.mrb[0].mxu0
        %1696 = vmatprep.mubr.f32.mxu0 0.0
        %1697 = vmatmul.mubr.f32.gmra.mrb[0].mxu0 %v1603
        %v1698 = vpop.f32.mrb[0].mxu0
        %v1699 = vadd.f32 0.0, %v1698
        %v1700 = vpop.f32.mrb[0].mxu0
        %1701 = vmatprep.mubr.f32.mxu0 0.0
        %1702 = vmatmul.mubr.f32.gmra.mrb[0].mxu0 %v1606
        %v1703 = vpop.f32.mrb[0].mxu0
        %v1704 = vadd.f32 0.0, %v1703
        %v1705 = vpop.f32.mrb[0].mxu0
        %1706 = vmatprep.mubr.f32.mxu0 0.0
        %1707 = vmatmul.mubr.f32.gmra.mrb[0].mxu0 %v1609
        %v1708 = vpop.f32.mrb[0].mxu0
        %v1709 = vadd.f32 0.0, %v1708
        %v1710 = vpop.f32.mrb[0].mxu0
        %1711 = vmatprep.mubr.f32.mxu0 0.0
        %1712 = vmatmul.mubr.f32.gmra.mrb[0].mxu0 %v1612
        %v1713 = vpop.f32.mrb[0].mxu0
        %v1714 = vadd.f32 0.0, %v1713
        %v1715 = vpop.f32.mrb[0].mxu0
        %1716 = vmatprep.mubr.f32.mxu0 0.0
        %1717 = vmatmul.mubr.f32.gmra.mrb[0].mxu0 %v1615
        %v1718 = vpop.f32.mrb[0].mxu0
        %v1719 = vadd.f32 0.0, %v1718
        %v1720 = vpop.f32.mrb[0].mxu0
        %1721 = vdwg.mxu0
        %v1723 = vsel %vm819, %v1538, 0
        %v1726 = vsel %vm819, %v1539, 0
        %1728 = vmatprep.subr.mxu0 0.0
        %1729 = vmatpush1.msra.mxu0 %v1684
        %1730 = vmatprep.subr.mxu0 0.0
        %1731 = vmatpush1.msra.mxu0 %v1689
        %1732 = vmatprep.subr.mxu0 0.0
        %1733 = vmatpush1.msra.mxu0 %v1694
        %1734 = vmatprep.subr.mxu0 0.0
        %1735 = vmatpush1.msra.mxu0 %v1699
        %1736 = vmatprep.subr.mxu0 0.0
        %1737 = vmatpush1.msra.mxu0 %v1704
        %1738 = vmatprep.subr.mxu0 0.0
        %1739 = vmatpush1.msra.mxu0 %v1709
        %1740 = vmatprep.subr.mxu0 0.0
        %1741 = vmatpush1.msra.mxu0 %v1714
        %1742 = vmatprep.subr.mxu0 0.0
        %1743 = vmatpush1.msra.mxu0 %v1719
        %1744 = vmatprep.subr.mxu0 0.0
        %1745 = vmatpush1.msra.mxu0 0.0
        %1746 = vmatprep.subr.mxu0 0.0
        %1747 = vmatpush1.msra.mxu0 0.0
        %1748 = vmatprep.subr.mxu0 0.0
        %1749 = vmatpush1.msra.mxu0 0.0
        %1750 = vmatprep.subr.mxu0 0.0
        %1751 = vmatpush1.msra.mxu0 0.0
        %1752 = vmatprep.subr.mxu0 0.0
        %1753 = vmatpush1.msra.mxu0 0.0
        %1754 = vmatprep.subr.mxu0 0.0
        %1755 = vmatpush1.msra.mxu0 0.0
        %1756 = vmatprep.subr.mxu0 0.0
        %1757 = vmatpush1.msra.mxu0 0.0
        %1758 = vmatprep.subr.mxu0 0.0
        %1759 = vmatpush1.msra.mxu0 0.0
        %1760 = vmatprep.subr.mxu0 0.0
        %1761 = vmatpush1.msra.mxu0 0.0
        %1762 = vmatprep.subr.mxu0 0.0
        %1763 = vmatpush1.msra.mxu0 0.0
        %1764 = vmatprep.subr.mxu0 0.0
        %1765 = vmatpush1.msra.mxu0 0.0
        %1766 = vmatprep.subr.mxu0 0.0
        %1767 = vmatpush1.msra.mxu0 0.0
        %1768 = vmatprep.subr.mxu0 0.0
        %1769 = vmatpush1.msra.mxu0 0.0
        %1770 = vmatprep.subr.mxu0 0.0
        %1771 = vmatpush1.msra.mxu0 0.0
        %1772 = vmatprep.subr.mxu0 0.0
        %1773 = vmatpush1.msra.mxu0 0.0
        %1774 = vmatprep.subr.mxu0 0.0
        %1775 = vmatpush1.msra.mxu0 0.0
        %1776 = vmatprep.subr.mxu0 0.0
        %1777 = vmatpush1.msra.mxu0 0.0
        %1778 = vmatprep.subr.mxu0 0.0
        %1779 = vmatpush1.msra.mxu0 0.0
        %1780 = vmatprep.subr.mxu0 0.0
        %1781 = vmatpush1.msra.mxu0 0.0
        %1782 = vmatprep.subr.mxu0 0.0
        %1783 = vmatpush1.msra.mxu0 0.0
        %1784 = vmatprep.subr.mxu0 0.0
        %1785 = vmatpush1.msra.mxu0 0.0
        %1786 = vmatprep.subr.mxu0 0.0
        %1787 = vmatpush1.msra.mxu0 0.0
        %1788 = vmatprep.subr.mxu0 0.0
        %1789 = vmatpush1.msra.mxu0 0.0
        %1790 = vmatprep.subr.mxu0 0.0
        %1791 = vmatpush1.msra.mxu0 0.0
        %1792 = vmatprep.mubr.f32.mxu0 0.0
        %1793 = vmatmul.mubr.f32.gmra.mrb[0].mxu0 %v1723
        %v1794 = vpop.f32.mrb[0].mxu0
        %v1795 = vadd.f32 0.0, %v1794
        %v1796 = vpop.f32.mrb[0].mxu0
        %1797 = vmatprep.mubr.f32.mxu0 0.0
        %1798 = vmatmul.mubr.f32.gmra.mrb[0].mxu0 %v1726
        %v1799 = vpop.f32.mrb[0].mxu0
        %v1800 = vadd.f32 0.0, %v1799
        %v1801 = vpop.f32.mrb[0].mxu0
        %1802 = vdwg.mxu0
        %v1803 = vmax.f32 %v1795, 0.01
        %v1804 = vmax.f32 %v1800, 0.01
        %v1805 = vrcp.pop %v1803
        %v1806 = vrcp.pop %v1804
        %1808 = vset.pattern.permute.xlu0 8
        %1809 = vperm.xlu0 %1808, %v1805
        %v1810 = vpop.permute.xlu0 %1809
        %1813 = vset.pattern.permute.xlu0 8
        %1814 = vperm.xlu0 %1813, %v1806
        %v1815 = vpop.permute.xlu0 %1814
        %v1817 = vmul.f32 %v1795, %v1810
        %v1818 = vmul.f32 %v1800, %v1815
        %1819 = vrot.lane.b32.xlu0 %v792, 104
        %v1820 = vpop.permute.xlu0 %1819
        %1821 = vrot.lane.b32.xlu0 %v793, 104
        %v1822 = vpop.permute.xlu0 %1821
        %v1825 = vsel %vm794, %v1820, 0.0
        %1826 = vadd.xlane.f32.xlu0 %v1825
        %v1827 = vpop.xlane.xlu0 %1826
        %v1828 = vsel %vm794, %v1822, 0.0
        %1829 = vadd.xlane.f32.xlu0 %v1828
        %v1830 = vpop.xlane.xlu0 %1829
        %v1831 = vmul.f32 %v1827, 0.17677669
        %v1832 = vmul.f32 %v1830, 0.17677669
        %1833 = vrot.lane.b32.xlu0 %v792, 72
        %v1834 = vpop.permute.xlu0 %1833
        %1835 = vrot.lane.b32.xlu0 %v793, 72
        %v1836 = vpop.permute.xlu0 %1835
        %v1839 = vsel %vm794, %v1834, 0.0
        %1840 = vadd.xlane.f32.xlu0 %v1839
        %v1841 = vpop.xlane.xlu0 %1840
        %v1842 = vsel %vm794, %v1836, 0.0
        %1843 = vadd.xlane.f32.xlu0 %v1842
        %v1844 = vpop.xlane.xlu0 %1843
        %v1845 = vmul.f32 %v1841, 0.17677669
        %v1846 = vmul.f32 %v1844, 0.17677669
        %v1847 = vsel %vm1160, %v632, -inf
        %1848 = vmax.xlane.f32.xlu0 %v1847
        %v1849 = vpop.xlane.xlu0 %1848
        %v1850 = vsel %vm1160, %v638, -inf
        %1851 = vmax.xlane.f32.xlu0 %v1850
        %v1852 = vpop.xlane.xlu0 %1851
        %v1853 = vsel %vm1160, %v709, -inf
        %v1854 = vsel %vm1160, %v715, -inf
        %v1855 = vmax.f32 %v1853, %v1854
        %1856 = vmax.xlane.f32.xlu0 %v1855
        %v1857 = vpop.xlane.xlu0 %1856
        %v1858 = vrot.slane %v1857, 4
        %v1859 = vmax.f32 %v1857, %v1858
        %v1860 = vrot.slane %v1859, 2
        %v1861 = vmax.f32 %v1859, %v1860
        %v1862 = vrot.slane %v1861, 1
        %v1863 = vmax.f32 %v1861, %v1862
        %s1864 = vtos %v1863
        %v1865 = vsub.f32 %v632, %v1831
        %v1866 = vsub.f32 %v638, %v1832
        %v1867 = vsub.f32 %v1865, %v1849
        %v1868 = vsub.f32 %v1866, %v1852
        %v1869 = vmul.f32 %v1867, 1.442695
        %v1870 = vpow.pop %v1869
        %v1871 = vmul.f32 %v1868, 1.442695
        %v1872 = vpow.pop %v1871
        %v1873 = vmul.f32 %v1870, 0.125
        %v1874 = vmul.f32 %v1872, 0.125
        %v1875 = vadd.f32 %v1873, 0.0001
        %v1876 = vadd.f32 %v1874, 0.0001
        %v1877 = vsub.f32 %v709, %v1845
        %v1878 = vsub.f32 %v715, %v1846
        %v1879 = vstv %s1864
        %v1880 = vsub.f32 %v1877, %v1879
        %v1881 = vsub.f32 %v1878, %v1879
        %v1882 = vmul.f32 %v1880, 1.442695
        %v1883 = vpow.pop %v1882
        %v1884 = vmul.f32 %v1881, 1.442695
        %v1885 = vpow.pop %v1884
        %v1886 = vmul.f32 %v1883, 0.125
        %v1887 = vmul.f32 %v1885, 0.125
        %v1888 = vadd.f32 %v1886, 0.0001
        %v1889 = vadd.f32 %v1887, 0.0001
        %1890 = vrot.lane.b32.xlu0 %v784, 40
        %v1891 = vpop.permute.xlu0 %1890
        %1892 = vrot.lane.b32.xlu0 %v789, 40
        %v1893 = vpop.permute.xlu0 %1892
        %v1896 = vsel %vm794, %v1891, 1.0
        %v1897 = vsel %vm794, %v1893, 1.0
        %1900 = vrot.lane.b32.xlu0 %v1888, 64
        %v1901 = vpop.permute.xlu0 %1900
        %1902 = vrot.lane.b32.xlu0 %v1889, 64
        %v1903 = vpop.permute.xlu0 %1902
        %1906 = vxpose.xlu0.b32.start [1/16] %v1901, 128
        %1907 = vxpose.xlu0.b32.cont [2/16] %v1903, 128
        %1908 = vxpose.xlu0.b32.cont [3/16] 0.0, 128
        %1909 = vxpose.xlu0.b32.cont [4/16] 0.0, 128
        %1910 = vxpose.xlu0.b32.cont [5/16] 0.0, 128
        %1911 = vxpose.xlu0.b32.cont [6/16] 0.0, 128
        %1912 = vxpose.xlu0.b32.cont [7/16] 0.0, 128
        %1913 = vxpose.xlu0.b32.cont [8/16] 0.0, 128
        %1914 = vxpose.xlu0.b32.cont [9/16] 0.0, 128
        %1915 = vxpose.xlu0.b32.cont [10/16] 0.0, 128
        %1916 = vxpose.xlu0.b32.cont [11/16] 0.0, 128
        %1917 = vxpose.xlu0.b32.cont [12/16] 0.0, 128
        %1918 = vxpose.xlu0.b32.cont [13/16] 0.0, 128
        %1919 = vxpose.xlu0.b32.cont [14/16] 0.0, 128
        %1920 = vxpose.xlu0.b32.cont [15/16] 0.0, 128
        %1921 = vxpose.xlu0.b32.end [16/16] 0.0, 128
        %v1922 = vpop.trf.xlu0
        %v1923 = vpop.trf.xlu0
        %v1924 = vpop.trf.xlu0
        %v1925 = vpop.trf.xlu0
        %v1926 = vpop.trf.xlu0
        %v1927 = vpop.trf.xlu0
        %v1928 = vpop.trf.xlu0
        %v1929 = vpop.trf.xlu0
        %v1930 = vpop.trf.xlu0
        %v1931 = vpop.trf.xlu0
        %v1932 = vpop.trf.xlu0
        %v1933 = vpop.trf.xlu0
        %v1934 = vpop.trf.xlu0
        %v1935 = vpop.trf.xlu0
        %v1936 = vpop.trf.xlu0
        %v1937 = vpop.trf.xlu0
        %v1939 = vsel %vm905, %v1922, 0
        %v1942 = vsel %vm905, %v1923, 0
        %v1945 = vsel %vm905, %v1924, 0
        %v1948 = vsel %vm905, %v1925, 0
        %v1951 = vsel %vm905, %v1926, 0
        %v1954 = vsel %vm905, %v1927, 0
        %v1957 = vsel %vm905, %v1928, 0
        %v1960 = vsel %vm905, %v1929, 0
        %1962 = vmatprep.subr.mxu0 0.0
        %1963 = vmatpush1.msra.mxu0 %v1896
        %1964 = vmatprep.subr.mxu0 0.0
        %1965 = vmatpush1.msra.mxu0 %v1897
        %1966 = vmatprep.subr.mxu0 0.0
        %1967 = vmatpush1.msra.mxu0 0.0
        %1968 = vmatprep.subr.mxu0 0.0
        %1969 = vmatpush1.msra.mxu0 0.0
        %1970 = vmatprep.subr.mxu0 0.0
        %1971 = vmatpush1.msra.mxu0 0.0
        %1972 = vmatprep.subr.mxu0 0.0
        %1973 = vmatpush1.msra.mxu0 0.0
        %1974 = vmatprep.subr.mxu0 0.0
        %1975 = vmatpush1.msra.mxu0 0.0
        %1976 = vmatprep.subr.mxu0 0.0
        %1977 = vmatpush1.msra.mxu0 0.0
        %1978 = vmatprep.subr.mxu0 0.0
        %1979 = vmatpush1.msra.mxu0 0.0
        %1980 = vmatprep.subr.mxu0 0.0
        %1981 = vmatpush1.msra.mxu0 0.0
        %1982 = vmatprep.subr.mxu0 0.0
        %1983 = vmatpush1.msra.mxu0 0.0
        %1984 = vmatprep.subr.mxu0 0.0
        %1985 = vmatpush1.msra.mxu0 0.0
        %1986 = vmatprep.subr.mxu0 0.0
        %1987 = vmatpush1.msra.mxu0 0.0
        %1988 = vmatprep.subr.mxu0 0.0
        %1989 = vmatpush1.msra.mxu0 0.0
        %1990 = vmatprep.subr.mxu0 0.0
        %1991 = vmatpush1.msra.mxu0 0.0
        %1992 = vmatprep.subr.mxu0 0.0
        %1993 = vmatpush1.msra.mxu0 0.0
        %1994 = vmatprep.subr.mxu0 0.0
        %1995 = vmatpush1.msra.mxu0 0.0
        %1996 = vmatprep.subr.mxu0 0.0
        %1997 = vmatpush1.msra.mxu0 0.0
        %1998 = vmatprep.subr.mxu0 0.0
        %1999 = vmatpush1.msra.mxu0 0.0
        %2000 = vmatprep.subr.mxu0 0.0
        %2001 = vmatpush1.msra.mxu0 0.0
        %2002 = vmatprep.subr.mxu0 0.0
        %2003 = vmatpush1.msra.mxu0 0.0
        %2004 = vmatprep.subr.mxu0 0.0
        %2005 = vmatpush1.msra.mxu0 0.0
        %2006 = vmatprep.subr.mxu0 0.0
        %2007 = vmatpush1.msra.mxu0 0.0
        %2008 = vmatprep.subr.mxu0 0.0
        %2009 = vmatpush1.msra.mxu0 0.0
        %2010 = vmatprep.subr.mxu0 0.0
        %2011 = vmatpush1.msra.mxu0 0.0
        %2012 = vmatprep.subr.mxu0 0.0
        %2013 = vmatpush1.msra.mxu0 0.0
        %2014 = vmatprep.subr.mxu0 0.0
        %2015 = vmatpush1.msra.mxu0 0.0
        %2016 = vmatprep.subr.mxu0 0.0
        %2017 = vmatpush1.msra.mxu0 0.0
        %2018 = vmatprep.subr.mxu0 0.0
        %2019 = vmatpush1.msra.mxu0 0.0
        %2020 = vmatprep.subr.mxu0 0.0
        %2021 = vmatpush1.msra.mxu0 0.0
        %2022 = vmatprep.subr.mxu0 0.0
        %2023 = vmatpush1.msra.mxu0 0.0
        %2024 = vmatprep.subr.mxu0 0.0
        %2025 = vmatpush1.msra.mxu0 0.0
        %2026 = vmatprep.mubr.f32.mxu0 0.0
        %2027 = vmatmul.mubr.f32.gmra.mrb[0].mxu0 %v1939
        %v2028 = vpop.f32.mrb[0].mxu0
        %v2029 = vadd.f32 0.0, %v2028
        %v2030 = vpop.f32.mrb[0].mxu0
        %2031 = vmatprep.mubr.f32.mxu0 0.0
        %2032 = vmatmul.mubr.f32.gmra.mrb[0].mxu0 %v1942
        %v2033 = vpop.f32.mrb[0].mxu0
        %v2034 = vadd.f32 0.0, %v2033
        %v2035 = vpop.f32.mrb[0].mxu0
        %2036 = vmatprep.mubr.f32.mxu0 0.0
        %2037 = vmatmul.mubr.f32.gmra.mrb[0].mxu0 %v1945
        %v2038 = vpop.f32.mrb[0].mxu0
        %v2039 = vadd.f32 0.0, %v2038
        %v2040 = vpop.f32.mrb[0].mxu0
        %2041 = vmatprep.mubr.f32.mxu0 0.0
        %2042 = vmatmul.mubr.f32.gmra.mrb[0].mxu0 %v1948
        %v2043 = vpop.f32.mrb[0].mxu0
        %v2044 = vadd.f32 0.0, %v2043
        %v2045 = vpop.f32.mrb[0].mxu0
        %2046 = vmatprep.mubr.f32.mxu0 0.0
        %2047 = vmatmul.mubr.f32.gmra.mrb[0].mxu0 %v1951
        %v2048 = vpop.f32.mrb[0].mxu0
        %v2049 = vadd.f32 0.0, %v2048
        %v2050 = vpop.f32.mrb[0].mxu0
        %2051 = vmatprep.mubr.f32.mxu0 0.0
        %2052 = vmatmul.mubr.f32.gmra.mrb[0].mxu0 %v1954
        %v2053 = vpop.f32.mrb[0].mxu0
        %v2054 = vadd.f32 0.0, %v2053
        %v2055 = vpop.f32.mrb[0].mxu0
        %2056 = vmatprep.mubr.f32.mxu0 0.0
        %2057 = vmatmul.mubr.f32.gmra.mrb[0].mxu0 %v1957
        %v2058 = vpop.f32.mrb[0].mxu0
        %v2059 = vadd.f32 0.0, %v2058
        %v2060 = vpop.f32.mrb[0].mxu0
        %2061 = vmatprep.mubr.f32.mxu0 0.0
        %2062 = vmatmul.mubr.f32.gmra.mrb[0].mxu0 %v1960
        %v2063 = vpop.f32.mrb[0].mxu0
        %v2064 = vadd.f32 0.0, %v2063
        %v2065 = vpop.f32.mrb[0].mxu0
        %2066 = vdwg.mxu0
        %2069 = vrot.lane.b32.xlu0 %v1875, 64
        %v2070 = vpop.permute.xlu0 %2069
        %2071 = vrot.lane.b32.xlu0 %v1876, 64
        %v2072 = vpop.permute.xlu0 %2071
        %v2073 = vsel %vm819, %v2070, 0
        %v2075 = vsel %vm819, %v2072, 0
        %2077 = vmatprep.subr.mxu0 0.0
        %2078 = vmatpush1.msra.mxu0 %v2029
        %2079 = vmatprep.subr.mxu0 0.0
        %2080 = vmatpush1.msra.mxu0 %v2034
        %2081 = vmatprep.subr.mxu0 0.0
        %2082 = vmatpush1.msra.mxu0 %v2039
        %2083 = vmatprep.subr.mxu0 0.0
        %2084 = vmatpush1.msra.mxu0 %v2044
        %2085 = vmatprep.subr.mxu0 0.0
        %2086 = vmatpush1.msra.mxu0 %v2049
        %2087 = vmatprep.subr.mxu0 0.0
        %2088 = vmatpush1.msra.mxu0 %v2054
        %2089 = vmatprep.subr.mxu0 0.0
        %2090 = vmatpush1.msra.mxu0 %v2059
        %2091 = vmatprep.subr.mxu0 0.0
        %2092 = vmatpush1.msra.mxu0 %v2064
        %2093 = vmatprep.subr.mxu0 0.0
        %2094 = vmatpush1.msra.mxu0 0.0
        %2095 = vmatprep.subr.mxu0 0.0
        %2096 = vmatpush1.msra.mxu0 0.0
        %2097 = vmatprep.subr.mxu0 0.0
        %2098 = vmatpush1.msra.mxu0 0.0
        %2099 = vmatprep.subr.mxu0 0.0
        %2100 = vmatpush1.msra.mxu0 0.0
        %2101 = vmatprep.subr.mxu0 0.0
        %2102 = vmatpush1.msra.mxu0 0.0
        %2103 = vmatprep.subr.mxu0 0.0
        %2104 = vmatpush1.msra.mxu0 0.0
        %2105 = vmatprep.subr.mxu0 0.0
        %2106 = vmatpush1.msra.mxu0 0.0
        %2107 = vmatprep.subr.mxu0 0.0
        %2108 = vmatpush1.msra.mxu0 0.0
        %2109 = vmatprep.subr.mxu0 0.0
        %2110 = vmatpush1.msra.mxu0 0.0
        %2111 = vmatprep.subr.mxu0 0.0
        %2112 = vmatpush1.msra.mxu0 0.0
        %2113 = vmatprep.subr.mxu0 0.0
        %2114 = vmatpush1.msra.mxu0 0.0
        %2115 = vmatprep.subr.mxu0 0.0
        %2116 = vmatpush1.msra.mxu0 0.0
        %2117 = vmatprep.subr.mxu0 0.0
        %2118 = vmatpush1.msra.mxu0 0.0
        %2119 = vmatprep.subr.mxu0 0.0
        %2120 = vmatpush1.msra.mxu0 0.0
        %2121 = vmatprep.subr.mxu0 0.0
        %2122 = vmatpush1.msra.mxu0 0.0
        %2123 = vmatprep.subr.mxu0 0.0
        %2124 = vmatpush1.msra.mxu0 0.0
        %2125 = vmatprep.subr.mxu0 0.0
        %2126 = vmatpush1.msra.mxu0 0.0
        %2127 = vmatprep.subr.mxu0 0.0
        %2128 = vmatpush1.msra.mxu0 0.0
        %2129 = vmatprep.subr.mxu0 0.0
        %2130 = vmatpush1.msra.mxu0 0.0
        %2131 = vmatprep.subr.mxu0 0.0
        %2132 = vmatpush1.msra.mxu0 0.0
        %2133 = vmatprep.subr.mxu0 0.0
        %2134 = vmatpush1.msra.mxu0 0.0
        %2135 = vmatprep.subr.mxu0 0.0
        %2136 = vmatpush1.msra.mxu0 0.0
        %2137 = vmatprep.subr.mxu0 0.0
        %2138 = vmatpush1.msra.mxu0 0.0
        %2139 = vmatprep.subr.mxu0 0.0
        %2140 = vmatpush1.msra.mxu0 0.0
        %2141 = vmatprep.mubr.f32.mxu0 0.0
        %2142 = vmatmul.mubr.f32.gmra.mrb[0].mxu0 %v2073
        %v2143 = vpop.f32.mrb[0].mxu0
        %v2144 = vadd.f32 0.0, %v2143
        %v2145 = vpop.f32.mrb[0].mxu0
        %2146 = vmatprep.mubr.f32.mxu0 0.0
        %2147 = vmatmul.mubr.f32.gmra.mrb[0].mxu0 %v2075
        %v2148 = vpop.f32.mrb[0].mxu0
        %v2149 = vadd.f32 0.0, %v2148
        %v2150 = vpop.f32.mrb[0].mxu0
        %2151 = vdwg.mxu0
        %v2152 = vmax.f32 %v2144, 0.01
        %v2153 = vmax.f32 %v2149, 0.01
        %v2154 = vrcp.pop %v2152
        %v2155 = vrcp.pop %v2153
        %2157 = vset.pattern.permute.xlu0 8
        %2158 = vperm.xlu0 %2157, %v2154
        %v2159 = vpop.permute.xlu0 %2158
        %2162 = vset.pattern.permute.xlu0 8
        %2163 = vperm.xlu0 %2162, %v2155
        %v2164 = vpop.permute.xlu0 %2163
        %v2166 = vmul.f32 %v2144, %v2159
        %v2167 = vmul.f32 %v2149, %v2164
        %2170 = vrot.lane.b32.xlu0 %v1480, 8
        %v2171 = vpop.permute.xlu0 %2170
        %2172 = vrot.lane.b32.xlu0 %v1481, 8
        %v2173 = vpop.permute.xlu0 %2172
        %2178 = vrot.lane.b32.xlu0 %v1817, 16
        %v2179 = vpop.permute.xlu0 %2178
        %2180 = vrot.lane.b32.xlu0 %v1818, 16
        %v2181 = vpop.permute.xlu0 %2180
        %2186 = vrot.lane.b32.xlu0 %v2166, 24
        %v2187 = vpop.permute.xlu0 %2186
        %2188 = vrot.lane.b32.xlu0 %v2167, 24
        %v2189 = vpop.permute.xlu0 %2188
        %v2192 = vsel %vm794, %v1130, %v2171
        %v2193 = vsel %vm794, %v1131, %v2173
        %v2194 = vsel %vm905, %v2192, %v2179
        %v2195 = vsel %vm905, %v2193, %v2181
        %vm2196 = vcmask 195584
        %v2197 = vsel %vm2196, %v2194, %v2187
        %v2198 = vsel %vm2196, %v2195, %v2189
        %v2199 = vld [vmem:[%s3] sm:$0xff]
        %v2200 = vld [vmem:[%s3 + $0x8] sm:$0xff]
        %v2201 = vld [vmem:[%s3 + $0x10] sm:$0xff]
        %v2202 = vld [vmem:[%s3 + $0x18] sm:$0xff]
        %v2203 = vld [vmem:[%s4] sm:$0x1]
        %v2205 = vlaneseq
        %v2206 = vshrl.u32 %v2205, 7
        %v2207 = vsub.s32 0, %v2206
        %v2208 = vrot.slane %v2203, %v2207
        %v2211 = vsel %vm328, %v2197, 0
        %v2214 = vsel %vm328, %v2198, 0
        %v2217 = vsel %vm328, %v2199, 0
        %v2220 = vsel %vm328, %v2200, 0
        %v2223 = vsel %vm328, %v2201, 0
        %v2226 = vsel %vm328, %v2202, 0
        %2228 = vmatprep.subr.mxu0 0.0
        %2229 = vmatpush1.xpose.msra.mxu0 %v2217
        %2230 = vmatprep.subr.mxu0 0.0
        %2231 = vmatpush1.xpose.msra.mxu0 %v2220
        %2232 = vmatprep.subr.mxu0 0.0
        %2233 = vmatpush1.xpose.msra.mxu0 %v2223
        %2234 = vmatprep.subr.mxu0 0.0
        %2235 = vmatpush1.xpose.msra.mxu0 %v2226
        %2236 = vmatprep.subr.mxu0 0.0
        %2237 = vmatpush1.xpose.msra.mxu0 0.0
        %2238 = vmatprep.subr.mxu0 0.0
        %2239 = vmatpush1.xpose.msra.mxu0 0.0
        %2240 = vmatprep.subr.mxu0 0.0
        %2241 = vmatpush1.xpose.msra.mxu0 0.0
        %2242 = vmatprep.subr.mxu0 0.0
        %2243 = vmatpush1.xpose.msra.mxu0 0.0
        %2244 = vmatprep.subr.mxu0 0.0
        %2245 = vmatpush1.xpose.msra.mxu0 0.0
        %2246 = vmatprep.subr.mxu0 0.0
        %2247 = vmatpush1.xpose.msra.mxu0 0.0
        %2248 = vmatprep.subr.mxu0 0.0
        %2249 = vmatpush1.xpose.msra.mxu0 0.0
        %2250 = vmatprep.subr.mxu0 0.0
        %2251 = vmatpush1.xpose.msra.mxu0 0.0
        %2252 = vmatprep.subr.mxu0 0.0
        %2253 = vmatpush1.xpose.msra.mxu0 0.0
        %2254 = vmatprep.subr.mxu0 0.0
        %2255 = vmatpush1.xpose.msra.mxu0 0.0
        %2256 = vmatprep.subr.mxu0 0.0
        %2257 = vmatpush1.xpose.msra.mxu0 0.0
        %2258 = vmatprep.subr.mxu0 0.0
        %2259 = vmatpush1.xpose.msra.mxu0 0.0
        %2260 = vmatprep.subr.mxu0 0.0
        %2261 = vmatpush1.xpose.msra.mxu0 0.0
        %2262 = vmatprep.subr.mxu0 0.0
        %2263 = vmatpush1.xpose.msra.mxu0 0.0
        %2264 = vmatprep.subr.mxu0 0.0
        %2265 = vmatpush1.xpose.msra.mxu0 0.0
        %2266 = vmatprep.subr.mxu0 0.0
        %2267 = vmatpush1.xpose.msra.mxu0 0.0
        %2268 = vmatprep.subr.mxu0 0.0
        %2269 = vmatpush1.xpose.msra.mxu0 0.0
        %2270 = vmatprep.subr.mxu0 0.0
        %2271 = vmatpush1.xpose.msra.mxu0 0.0
        %2272 = vmatprep.subr.mxu0 0.0
        %2273 = vmatpush1.xpose.msra.mxu0 0.0
        %2274 = vmatprep.subr.mxu0 0.0
        %2275 = vmatpush1.xpose.msra.mxu0 0.0
        %2276 = vmatprep.subr.mxu0 0.0
        %2277 = vmatpush1.xpose.msra.mxu0 0.0
        %2278 = vmatprep.subr.mxu0 0.0
        %2279 = vmatpush1.xpose.msra.mxu0 0.0
        %2280 = vmatprep.subr.mxu0 0.0
        %2281 = vmatpush1.xpose.msra.mxu0 0.0
        %2282 = vmatprep.subr.mxu0 0.0
        %2283 = vmatpush1.xpose.msra.mxu0 0.0
        %2284 = vmatprep.subr.mxu0 0.0
        %2285 = vmatpush1.xpose.msra.mxu0 0.0
        %2286 = vmatprep.subr.mxu0 0.0
        %2287 = vmatpush1.xpose.msra.mxu0 0.0
        %2288 = vmatprep.subr.mxu0 0.0
        %2289 = vmatpush1.xpose.msra.mxu0 0.0
        %2290 = vmatprep.subr.mxu0 0.0
        %2291 = vmatpush1.xpose.msra.mxu0 0.0
        %2292 = vmatprep.mubr.f32.mxu0 0.0
        %2293 = vmatmul.mubr.f32.gmra.mrb[0].mxu0 %v2211
        %v2294 = vpop.f32.mrb[0].mxu0
        %v2295 = vadd.f32 %v2208, %v2294
        %v2296 = vpop.f32.mrb[0].mxu0
        %2297 = vmatprep.mubr.f32.mxu0 0.0
        %2298 = vmatmul.mubr.f32.gmra.mrb[0].mxu0 %v2214
        %v2299 = vpop.f32.mrb[0].mxu0
        %v2300 = vadd.f32 %v2208, %v2299
        %v2301 = vpop.f32.mrb[0].mxu0
        %2302 = vdwg.mxu0
        %2303 = vst.msk [vmem:[%s217] sm:$0xff] %vm328, %v2295
        %2304 = vst.msk [vmem:[%s217 + $0x8] sm:$0xff] %vm328, %v2300
        %s2305 = sand.u32 %s137, 1
        %s2306 = scalar_lea.sflag [#allocation3], %s2305
        %s2307 = sand.u32 %s137, 1
        %s2308 = smul.addr %s2307, 16
        %s2309 = scalar_lea.vmem [#allocation2], %s2308
        // Predicated region
        $region41: #{tpu_custom_call.1} parent=39 // pred_check
          %p2310 = pneg %p147
        $region42: #{tpu_custom_call.1} parent=39 // pred_check_branch
          %2312 = sbr.rel (%p2310) target = $region44
        $region43: #{tpu_custom_call.1} parent=39 // pred_region
          %s2314 = ssub.s32 256, 256
          %2315 = vsyncadd %s2306, %s2314
          %s2316 = smul.addr %s19, 2
          %s2317 = smul.addr %s2316, 128
          %s2318 = scalar_lea.hbm %s5, %s2317
          %s2319 = sshll.u32 %s2309, 4
          %s2320 = int_to_ptr.vmem [resolvable:$true] %s2319
          %2325 = dma.vmem_to_hbm [thread:$0]  %s2320, 256, %s2318, %s2306, 128, 128, 8
        $region44: #{tpu_custom_call.1} parent=39 // pred_fallthru
          _
      $region40: #{tpu_custom_call.1} parent=5 // pred_fallthru
        _
      %p2326 = scmp.le.s32.totalorder 2, %s14
      // Predicated region
      $region45: #{tpu_custom_call.1} parent=5 // pred_check
        %p2327 = pneg %p2326
      $region46: #{tpu_custom_call.1} parent=5 // pred_check_branch
        %2329 = sbr.rel (%p2327) target = $region48
      $region47: #{tpu_custom_call.1} parent=5 // pred_region
        %s2330 = ssub.s32 %s14, 2
        // Predicated region
        $region49: #{tpu_custom_call.1} parent=47 // pred_check
          %p2331 = pneg %p153
        $region50: #{tpu_custom_call.1} parent=47 // pred_check_branch
          %2333 = sbr.rel (%p2331) target = $region52
        $region51: #{tpu_custom_call.1} parent=47 // pred_region
          %s2334 = sand.u32 %s138, 1
          %s2335 = scalar_lea.sflag [#allocation3], %s2334
          %s2336 = sand.u32 %s138, 1
          %s2337 = smul.addr %s2336, 16
          %s2338 = scalar_lea.vmem [#allocation2], %s2337
          %2339 = dma.done %s2335, 256
        $region52: #{tpu_custom_call.1} parent=47 // pred_fallthru
          _
      $region48: #{tpu_custom_call.1} parent=5 // pred_fallthru
        _
    $region6: #{tpu_custom_call.1} parent=1 // loop_footer
      %s18 = sadd.s32 1, %s14
    $region7: #{tpu_custom_call.1} parent=1 // loop_footer_branch
      %13 = sbr.rel target = $region3
    $region8: #{tpu_custom_call.1} parent=1 // loop_exit
      _
    %2340 = vsyncpa [#allocation3], 1
    %s2341 = scalar_lea.sflag [#allocation3], 1
    %2342 = vsyncpa %s2341, 1

</llo_original>
